<compile_context>
chip_gen: v6e
topology: v6e:2x2x1
jax: 0.10.0
libtpu: 0.0.40
codegen_flags: <defaults>
</compile_context>

<pallas_src>
import functools
import math

import jax
import jax.numpy as jnp
from jax.experimental import pallas as pl
from jax.experimental.pallas import tpu as pltpu

LANE = 128
SUBLANE = 8
MIN_TB = 128     # lane-dense (2, TB) output block requires TB % 128 == 0
DEF_TB = 1024    # default batch tile (amortizes ~0.35 us/grid-step overhead)


def _round_up(n, m):
    return ((n + m - 1) // m) * m


def _mish(x):
    # mish(x) = x * tanh(softplus(x)) = x * t(t+2) / (t(t+2)+2), t = exp(x).
    # min(x,20) keeps exp finite; at the clamp 2/den < f32 eps so y == x anyway
    # (no passthrough select needed), and the approx EUP reciprocal is already
    # more accurate than the bf16 cast every hidden activation goes through.
    t = jnp.exp(jnp.minimum(x, 20.0))
    num = t * (t + 2.0)
    return x * num * pl.reciprocal(num + 2.0, approx=True)


def _kernel_fused(x_ref, w1_ref, b1_ref, w23_ref, b23_ref, w4_ref, b4_ref,
                  out_ref):
    # v6e/v7x (256-wide MXU): layers 2/3 as one block-diagonal (2Hp x 2Hp) dot.
    h = _mish(jnp.dot(x_ref[...], w1_ref[...],
                      preferred_element_type=jnp.float32) + b1_ref[...])
    for l in range(2):
        h = _mish(jnp.dot(h.astype(jnp.bfloat16), w23_ref[l],
                          preferred_element_type=jnp.float32) + b23_ref[l])
    # Lane-dense output: (2, 2Hp) . (TB, 2Hp)^T -> (2, TB); q1 row 0, q2 row 1.
    out_ref[...] = jax.lax.dot_general(
        w4_ref[...], h.astype(jnp.bfloat16),
        dimension_numbers=(((1,), (1,)), ((), ())),
        preferred_element_type=jnp.float32) + b4_ref[...]


def _kernel_split(x_ref, w1_ref, b1_ref, w23_ref, b23_ref, w4_ref, b4_ref,
                  out_ref, *, hp):
    # v5e and older (128-wide MXU): two (TB,Hp)x(Hp,Hp) dots per hidden layer so
    # the MXU does not spend half its MACs on block-diagonal structural zeros.
    h = _mish(jnp.dot(x_ref[...], w1_ref[...],
                      preferred_element_type=jnp.float32) + b1_ref[...])
    for l in range(2):
        hl = jnp.dot(h[:, :hp].astype(jnp.bfloat16), w23_ref[l, 0],
                     preferred_element_type=jnp.float32)
        hr = jnp.dot(h[:, hp:].astype(jnp.bfloat16), w23_ref[l, 1],
                     preferred_element_type=jnp.float32)
        h = _mish(jnp.concatenate([hl, hr], axis=-1) + b23_ref[l])
    out_ref[...] = jax.lax.dot_general(
        w4_ref[...], h.astype(jnp.bfloat16),
        dimension_numbers=(((1,), (1,)), ((), ())),
        preferred_element_type=jnp.float32) + b4_ref[...]


def _pack_params(params, in_dim, hidden_dim, fuse_hidden):
    """Fuse qf1/qf2 into one wide MLP, pad to TPU tiles, cast weights to bf16."""
    D, H = in_dim, hidden_dim
    Dp = _round_up(D, 16)                       # bf16 sublane pack only (stays thin)
    Hp = _round_up(max(H, LANE), LANE)
    H2 = 2 * Hp
    p1, p2 = params["qf1"], params["qf2"]
    f32 = jnp.float32

    w1 = (jnp.zeros((Dp, H2), f32)
          .at[:D, :H].set(p1[0]).at[:D, Hp:Hp + H].set(p2[0]))
    b1 = (jnp.zeros((1, H2), f32)
          .at[0, :H].set(p1[1]).at[0, Hp:Hp + H].set(p2[1]))

    def cat_bias(ba, bb):
        return (jnp.zeros((1, H2), f32)
                .at[0, :H].set(ba).at[0, Hp:Hp + H].set(bb))

    if fuse_hidden:
        def block_diag(wa, wb):
            return (jnp.zeros((H2, H2), f32)
                    .at[:H, :H].set(wa).at[Hp:Hp + H, Hp:Hp + H].set(wb))
        w23 = jnp.stack([block_diag(p1[2], p2[2]),
                         block_diag(p1[4], p2[4])])          # (2, 2Hp, 2Hp)
    else:
        def diag_blocks(wa, wb):
            za = jnp.zeros((Hp, Hp), f32).at[:H, :H].set(wa)
            zb = jnp.zeros((Hp, Hp), f32).at[:H, :H].set(wb)
            return jnp.stack([za, zb])
        w23 = jnp.stack([diag_blocks(p1[2], p2[2]),
                         diag_blocks(p1[4], p2[4])])          # (2, 2, Hp, Hp)

    b23 = jnp.stack([cat_bias(p1[3], p2[3]), cat_bias(p1[5], p2[5])])  # (2,1,2Hp)

    # Final layer packed lane-dense: q1 from row 0, q2 from row 1.
    w4 = (jnp.zeros((2, H2), f32)
          .at[0, :H].set(p1[6][:, 0]).at[1, Hp:Hp + H].set(p2[6][:, 0]))
    b4 = jnp.stack([p1[7], p2[7]]).astype(f32)                # (2, 1)

    bf16 = lambda a: a.astype(jnp.bfloat16)
    return bf16(w1), b1, bf16(w23), b23, bf16(w4), b4, Dp, Hp, H2


def _mxu_is_256_wide():
    # v6e / v7x have a 256x256 MXU (keep the 2Hp-wide block-diagonal fusion);
    # v5e and older have 128-wide MXUs (un-fuse the hidden layers there).
    try:
        kind = jax.devices()[0].device_kind.lower()
    except Exception:
        return True
    return not any(tag in kind for tag in ("v2", "v3", "v4", "v5"))


def hindsight_critic_forward(state, action, goal, params, hidden_dim,
                             batch_tile=None, fuse_hidden=None):
    """Returns (q1, q2), each [B,1] float32 — same semantics as HindsightCritic.forward."""
    if fuse_hidden is None:
        fuse_hidden = _mxu_is_256_wide()

    # Straight to bf16 (MXU input dtype), no f32 round trip; feature dim only
    # padded to a multiple of 16 so the x materialization is ~2*Dp B/row.
    x = jnp.concatenate(
        [state.astype(jnp.bfloat16), action.astype(jnp.bfloat16),
         goal.astype(jnp.bfloat16)], axis=-1)
    B, D = x.shape

    (w1, b1, w23, b23, w4, b4, Dp, Hp, H2) = _pack_params(
        params, D, hidden_dim, fuse_hidden)

    if batch_tile is not None:
        TB = _round_up(batch_tile, MIN_TB)
    else:
        TB = DEF_TB
        # Keep >= 2 grid steps when the batch allows it so the "parallel" batch
        # axis actually spans both TensorCores on v7x.
        while TB > MIN_TB and _round_up(B, TB) < 2 * TB:
            TB //= 2
    Bp = _round_up(max(B, TB), TB)

    x_pad = jnp.zeros((Bp, Dp), jnp.bfloat16).at[:B, :D].set(x)

    c2 = lambda i: (0, 0)
    c3 = lambda i: (0, 0, 0)
    c4 = lambda i: (0, 0, 0, 0)
    w23_spec = pl.BlockSpec(tuple(w23.shape), c3 if fuse_hidden else c4)

    if fuse_hidden:
        kernel = _kernel_fused
        mm_flops = 2 * Bp * (Dp * H2 + 2 * H2 * H2 + 2 * H2)
    else:
        kernel = functools.partial(_kernel_split, hp=Hp)
        mm_flops = 2 * Bp * (Dp * H2 + 4 * Hp * Hp + 2 * H2)

    weights_bytes = sum(int(a.size) * a.dtype.itemsize
                        for a in (w1, b1, w23, b23, w4, b4))
    cost = pl.CostEstimate(
        flops=int(mm_flops),
        transcendentals=int(3 * Bp * H2),
        bytes_accessed=int(Bp * Dp * 2 + 2 * Bp * 4 + weights_bytes))

    out = pl.pallas_call(
        kernel,
        grid=(Bp // TB,),
        in_specs=[
            pl.BlockSpec((TB, Dp), lambda i: (i, 0)),   # x: streamed over batch
            pl.BlockSpec((Dp, H2), c2),                 # fused W1 (grid-resident)
            pl.BlockSpec((1, H2), c2),                  # fused b1
            w23_spec,                                   # W2/W3 slab
            pl.BlockSpec((2, 1, H2), c3),               # b2/b3 slab
            pl.BlockSpec((2, H2), c2),                  # packed W4 (lane-dense out)
            pl.BlockSpec((2, 1), c2),                   # packed b4
        ],
        out_specs=pl.BlockSpec((2, TB), lambda i: (0, i)),
        out_shape=jax.ShapeDtypeStruct((2, Bp), jnp.float32),
        compiler_params=pltpu.CompilerParams(
            dimension_semantics=("parallel",)),
        cost_estimate=cost,
    )(x_pad, w1, b1, w23, b23, w4, b4)

    return out[0, :B][:, None], out[1, :B][:, None]


# ------------------------- deterministic parameter init -------------------------

def _init_linear(key, fan_in, fan_out):
    # Mimics torch.nn.Linear default init; stored transposed as (in, out).
    kw, kb = jax.random.split(key)
    bound = 1.0 / math.sqrt(fan_in)
    w = jax.random.uniform(kw, (fan_in, fan_out), jnp.float32, -bound, bound)
    b = jax.random.uniform(kb, (fan_out,), jnp.float32, -bound, bound)
    return w, b


def _init_qf(key, in_dim, hidden_dim):
    k1, k2, k3, k4 = jax.random.split(key, 4)
    w1, b1 = _init_linear(k1, in_dim, hidden_dim)
    w2, b2 = _init_linear(k2, hidden_dim, hidden_dim)
    w3, b3 = _init_linear(k3, hidden_dim, hidden_dim)
    w4, b4 = _init_linear(k4, hidden_dim, 1)
    return (w1, b1, w2, b2, w3, b3, w4, b4)


# ------------------------------ pure-JAX references ------------------------------

def _reference_forward(state, action, goal, params, bf16_matmul):
    x = jnp.concatenate([state, action, goal], axis=-1).astype(jnp.float32)
    cast = (lambda a: a.astype(jnp.bfloat16)) if bf16_matmul else (lambda a: a)
    mish = lambda v: v * jnp.tanh(jax.nn.softplus(v))

    def mlp(p):
        w1, b1, w2, b2, w3, b3, w4, b4 = p
        h = x
        for w, b in ((w1, b1), (w2, b2), (w3, b3)):
            h = mish(jnp.dot(cast(h), cast(w),
                             preferred_element_type=jnp.float32) + b)
        return jnp.dot(cast(h), cast(w4),
                       preferred_element_type=jnp.float32) + b4

    return mlp(params["qf1"]), mlp(params["qf2"])


if __name__ == "__main__":
    # Small shapes consistent with the module's forward().
    state_dim, action_dim, goal_dim = 11, 3, 2
    hidden_dim = 128
    batch = 200   # not a multiple of the 128-row tile -> exercises padding; grid=(2,)

    key = jax.random.PRNGKey(0)
    k_s, k_a, k_g, k_q1, k_q2 = jax.random.split(key, 5)

    state = jax.random.normal(k_s, (batch, state_dim), jnp.float32)
    action = jax.random.normal(k_a, (batch, action_dim), jnp.float32)
    goal = jax.random.normal(k_g, (batch, goal_dim), jnp.float32)

    in_dim = state_dim + action_dim + goal_dim
    params = {
        "qf1": _init_qf(k_q1, in_dim, hidden_dim),
        "qf2": _init_qf(k_q2, in_dim, hidden_dim),
    }
    # TODO(synk): qf1_target/qf2_target/actor heads exist in __init__ but are not
    # used by forward(); forward_target/forward_actor would reuse this same
    # fused kernel with their own packed parameters.

    # References: same bf16-input / f32-accum matmul semantics, and full f32.
    r1, r2 = _reference_forward(state, action, goal, params, bf16_matmul=True)
    f1, f2 = _reference_forward(state, action, goal, params, bf16_matmul=False)

    # Auto (chip-dependent) path plus both explicit per-generation variants.
    configs = [dict(),                                   # auto fused/split, auto TB
               dict(fuse_hidden=True),                   # v6e/v7x path
               dict(fuse_hidden=False, batch_tile=128)]  # v5e path
    for cfg in configs:
        q1, q2 = hindsight_critic_forward(state, action, goal, params,
                                          hidden_dim, **cfg)
        q1 = jax.block_until_ready(q1)
        q2 = jax.block_until_ready(q2)
        assert q1.shape == (batch, 1) and q2.shape == (batch, 1)
        assert jnp.allclose(q1, r1, rtol=5e-3, atol=5e-3), \
            f"{cfg}: max err vs bf16 ref: {jnp.max(jnp.abs(q1 - r1))}"
        assert jnp.allclose(q2, r2, rtol=5e-3, atol=5e-3), \
            f"{cfg}: max err vs bf16 ref: {jnp.max(jnp.abs(q2 - r2))}"
        assert jnp.allclose(q1, f1, rtol=5e-2, atol=5e-2)
        assert jnp.allclose(q2, f2, rtol=5e-2, atol=5e-2)

    print("KERNEL_OK")
</pallas_src>

<mosaic_0001>
module attributes {stable_mosaic.version = 11 : i64} {
  func.func @_kernel_fused(%arg0: i32, %arg1: memref<128x16xbf16, #tpu.memory_space<vmem>>, %arg2: memref<16x256xbf16, #tpu.memory_space<vmem>>, %arg3: memref<1x256xf32, #tpu.memory_space<vmem>>, %arg4: memref<2x256x256xbf16, #tpu.memory_space<vmem>>, %arg5: memref<2x1x256xf32, #tpu.memory_space<vmem>>, %arg6: memref<2x256xbf16, #tpu.memory_space<vmem>>, %arg7: memref<2x1xf32, #tpu.memory_space<vmem>>, %arg8: memref<2x128xf32, #tpu.memory_space<vmem>>) attributes {dimension_semantics = [#tpu.dimension_semantics<parallel>], iteration_bounds = array<i64: 2>, scalar_prefetch = 0 : i64, scratch_operands = 0 : i64, tpu.core_type = #tpu.core_type<tc>, window_params = [{transform_indices = @transform_0, window_bounds = array<i64: 128, 16>}, {pipeline_mode = #tpu.pipeline_mode<synchronous>, transform_indices = @transform_1, window_bounds = array<i64: 16, 256>}, {pipeline_mode = #tpu.pipeline_mode<synchronous>, transform_indices = @transform_2, window_bounds = array<i64: 1, 256>}, {pipeline_mode = #tpu.pipeline_mode<synchronous>, transform_indices = @transform_3, window_bounds = array<i64: 2, 256, 256>}, {pipeline_mode = #tpu.pipeline_mode<synchronous>, transform_indices = @transform_4, window_bounds = array<i64: 2, 1, 256>}, {pipeline_mode = #tpu.pipeline_mode<synchronous>, transform_indices = @transform_5, window_bounds = array<i64: 2, 256>}, {pipeline_mode = #tpu.pipeline_mode<synchronous>, transform_indices = @transform_6, window_bounds = array<i64: 2, 1>}, {transform_indices = @transform_7, window_bounds = array<i64: 2, 128>}]} {
    %c0 = arith.constant 0 : index
    %c0_0 = arith.constant 0 : index
    %0 = vector.load %arg1[%c0, %c0_0] : memref<128x16xbf16, #tpu.memory_space<vmem>>, vector<128x16xbf16>
    %c0_1 = arith.constant 0 : index
    %c0_2 = arith.constant 0 : index
    %1 = vector.load %arg2[%c0_1, %c0_2] : memref<16x256xbf16, #tpu.memory_space<vmem>>, vector<16x256xbf16>
    %cst = arith.constant dense<0.000000e+00> : vector<128x256xf32>
    %2 = tpu.matmul %0, %1, %cst {dimension_numbers = #tpu.dot_dimension_numbers<[1], [0], [0], [1], [0, 0, 1, 1], [], []>} : vector<128x16xbf16>, vector<16x256xbf16>, vector<128x256xf32> -> vector<128x256xf32>
    %c0_3 = arith.constant 0 : index
    %c0_4 = arith.constant 0 : index
    %3 = vector.load %arg3[%c0_3, %c0_4] : memref<1x256xf32, #tpu.memory_space<vmem>>, vector<1x256xf32>
    %4 = vector.broadcast %3 : vector<1x256xf32> to vector<128x256xf32>
    %5 = arith.addf %2, %4 : vector<128x256xf32>
    %cst_5 = arith.constant 2.000000e+01 : f32
    %6 = vector.broadcast %cst_5 : f32 to vector<128x256xf32>
    %7 = arith.minimumf %5, %6 : vector<128x256xf32>
    %8 = math.exp %7 : vector<128x256xf32>
    %cst_6 = arith.constant 2.000000e+00 : f32
    %9 = vector.broadcast %cst_6 : f32 to vector<128x256xf32>
    %10 = arith.addf %8, %9 : vector<128x256xf32>
    %11 = arith.mulf %8, %10 : vector<128x256xf32>
    %12 = arith.mulf %5, %11 : vector<128x256xf32>
    %cst_7 = arith.constant 2.000000e+00 : f32
    %13 = vector.broadcast %cst_7 : f32 to vector<128x256xf32>
    %14 = arith.addf %11, %13 : vector<128x256xf32>
    %15 = tpu.reciprocal %14 {approx = true} : vector<128x256xf32> -> vector<128x256xf32>
    %16 = arith.mulf %12, %15 : vector<128x256xf32>
    %17 = arith.truncf %16 : vector<128x256xf32> to vector<128x256xbf16>
    %c0_8 = arith.constant 0 : index
    %c0_9 = arith.constant 0 : index
    %c0_10 = arith.constant 0 : index
    %18 = vector.load %arg4[%c0_8, %c0_9, %c0_10] : memref<2x256x256xbf16, #tpu.memory_space<vmem>>, vector<1x256x256xbf16>
    %19 = vector.shape_cast %18 : vector<1x256x256xbf16> to vector<256x256xbf16>
    %cst_11 = arith.constant dense<0.000000e+00> : vector<128x256xf32>
    %20 = tpu.matmul %17, %19, %cst_11 {dimension_numbers = #tpu.dot_dimension_numbers<[1], [0], [0], [1], [0, 0, 1, 1], [], []>} : vector<128x256xbf16>, vector<256x256xbf16>, vector<128x256xf32> -> vector<128x256xf32>
    %c0_12 = arith.constant 0 : index
    %c0_13 = arith.constant 0 : index
    %c0_14 = arith.constant 0 : index
    %21 = vector.load %arg5[%c0_12, %c0_13, %c0_14] : memref<2x1x256xf32, #tpu.memory_space<vmem>>, vector<1x1x256xf32>
    %22 = vector.shape_cast %21 : vector<1x1x256xf32> to vector<1x256xf32>
    %23 = vector.broadcast %22 : vector<1x256xf32> to vector<128x256xf32>
    %24 = arith.addf %20, %23 : vector<128x256xf32>
    %cst_15 = arith.constant 2.000000e+01 : f32
    %25 = vector.broadcast %cst_15 : f32 to vector<128x256xf32>
    %26 = arith.minimumf %24, %25 : vector<128x256xf32>
    %27 = math.exp %26 : vector<128x256xf32>
    %cst_16 = arith.constant 2.000000e+00 : f32
    %28 = vector.broadcast %cst_16 : f32 to vector<128x256xf32>
    %29 = arith.addf %27, %28 : vector<128x256xf32>
    %30 = arith.mulf %27, %29 : vector<128x256xf32>
    %31 = arith.mulf %24, %30 : vector<128x256xf32>
    %cst_17 = arith.constant 2.000000e+00 : f32
    %32 = vector.broadcast %cst_17 : f32 to vector<128x256xf32>
    %33 = arith.addf %30, %32 : vector<128x256xf32>
    %34 = tpu.reciprocal %33 {approx = true} : vector<128x256xf32> -> vector<128x256xf32>
    %35 = arith.mulf %31, %34 : vector<128x256xf32>
    %36 = arith.truncf %35 : vector<128x256xf32> to vector<128x256xbf16>
    %c1 = arith.constant 1 : index
    %c0_18 = arith.constant 0 : index
    %c0_19 = arith.constant 0 : index
    %37 = vector.load %arg4[%c1, %c0_18, %c0_19] : memref<2x256x256xbf16, #tpu.memory_space<vmem>>, vector<1x256x256xbf16>
    %38 = vector.shape_cast %37 : vector<1x256x256xbf16> to vector<256x256xbf16>
    %cst_20 = arith.constant dense<0.000000e+00> : vector<128x256xf32>
    %39 = tpu.matmul %36, %38, %cst_20 {dimension_numbers = #tpu.dot_dimension_numbers<[1], [0], [0], [1], [0, 0, 1, 1], [], []>} : vector<128x256xbf16>, vector<256x256xbf16>, vector<128x256xf32> -> vector<128x256xf32>
    %c1_21 = arith.constant 1 : index
    %c0_22 = arith.constant 0 : index
    %c0_23 = arith.constant 0 : index
    %40 = vector.load %arg5[%c1_21, %c0_22, %c0_23] : memref<2x1x256xf32, #tpu.memory_space<vmem>>, vector<1x1x256xf32>
    %41 = vector.shape_cast %40 : vector<1x1x256xf32> to vector<1x256xf32>
    %42 = vector.broadcast %41 : vector<1x256xf32> to vector<128x256xf32>
    %43 = arith.addf %39, %42 : vector<128x256xf32>
    %cst_24 = arith.constant 2.000000e+01 : f32
    %44 = vector.broadcast %cst_24 : f32 to vector<128x256xf32>
    %45 = arith.minimumf %43, %44 : vector<128x256xf32>
    %46 = math.exp %45 : vector<128x256xf32>
    %cst_25 = arith.constant 2.000000e+00 : f32
    %47 = vector.broadcast %cst_25 : f32 to vector<128x256xf32>
    %48 = arith.addf %46, %47 : vector<128x256xf32>
    %49 = arith.mulf %46, %48 : vector<128x256xf32>
    %50 = arith.mulf %43, %49 : vector<128x256xf32>
    %cst_26 = arith.constant 2.000000e+00 : f32
    %51 = vector.broadcast %cst_26 : f32 to vector<128x256xf32>
    %52 = arith.addf %49, %51 : vector<128x256xf32>
    %53 = tpu.reciprocal %52 {approx = true} : vector<128x256xf32> -> vector<128x256xf32>
    %54 = arith.mulf %50, %53 : vector<128x256xf32>
    %c0_27 = arith.constant 0 : index
    %c0_28 = arith.constant 0 : index
    %55 = vector.load %arg6[%c0_27, %c0_28] : memref<2x256xbf16, #tpu.memory_space<vmem>>, vector<2x256xbf16>
    %56 = arith.truncf %54 : vector<128x256xf32> to vector<128x256xbf16>
    %cst_29 = arith.constant dense<0.000000e+00> : vector<2x128xf32>
    %57 = tpu.matmul %55, %56, %cst_29 {dimension_numbers = #tpu.dot_dimension_numbers<[1], [1], [0], [0], [0, 0, 1, 0], [], []>} : vector<2x256xbf16>, vector<128x256xbf16>, vector<2x128xf32> -> vector<2x128xf32>
    %c0_30 = arith.constant 0 : index
    %c0_31 = arith.constant 0 : index
    %58 = vector.load %arg7[%c0_30, %c0_31] : memref<2x1xf32, #tpu.memory_space<vmem>>, vector<2x1xf32>
    %59 = vector.broadcast %58 : vector<2x1xf32> to vector<2x128xf32>
    %60 = arith.addf %57, %59 : vector<2x128xf32>
    %c0_32 = arith.constant 0 : index
    %c0_33 = arith.constant 0 : index
    %61 = vector.load %arg8[%c0_32, %c0_33] : memref<2x128xf32, #tpu.memory_space<vmem>>, vector<2x128xf32>
    tpu.vector_store %arg8[%c0_32, %c0_33], %60 {strides = array<i32>} : memref<2x128xf32, #tpu.memory_space<vmem>>, vector<2x128xf32>,
    return
  }
  func.func @transform_0(%arg0: i32) -> (i32, i32) {
    %c0_i32 = arith.constant 0 : i32
    %c0_i32_0 = arith.constant 0 : i32
    return %arg0, %c0_i32 : i32, i32
  }
  func.func @transform_1(%arg0: i32) -> (i32, i32) {
    %c0_i32 = arith.constant 0 : i32
    %c0_i32_0 = arith.constant 0 : i32
    %c0_i32_1 = arith.constant 0 : i32
    return %c0_i32, %c0_i32_0 : i32, i32
  }
  func.func @transform_2(%arg0: i32) -> (i32, i32) {
    %c0_i32 = arith.constant 0 : i32
    %c0_i32_0 = arith.constant 0 : i32
    %c0_i32_1 = arith.constant 0 : i32
    return %c0_i32, %c0_i32_0 : i32, i32
  }
  func.func @transform_3(%arg0: i32) -> (i32, i32, i32) {
    %c0_i32 = arith.constant 0 : i32
    %c0_i32_0 = arith.constant 0 : i32
    %c0_i32_1 = arith.constant 0 : i32
    %c0_i32_2 = arith.constant 0 : i32
    return %c0_i32, %c0_i32_0, %c0_i32_1 : i32, i32, i32
  }
  func.func @transform_4(%arg0: i32) -> (i32, i32, i32) {
    %c0_i32 = arith.constant 0 : i32
    %c0_i32_0 = arith.constant 0 : i32
    %c0_i32_1 = arith.constant 0 : i32
    %c0_i32_2 = arith.constant 0 : i32
    return %c0_i32, %c0_i32_0, %c0_i32_1 : i32, i32, i32
  }
  func.func @transform_5(%arg0: i32) -> (i32, i32) {
    %c0_i32 = arith.constant 0 : i32
    %c0_i32_0 = arith.constant 0 : i32
    %c0_i32_1 = arith.constant 0 : i32
    return %c0_i32, %c0_i32_0 : i32, i32
  }
  func.func @transform_6(%arg0: i32) -> (i32, i32) {
    %c0_i32 = arith.constant 0 : i32
    %c0_i32_0 = arith.constant 0 : i32
    %c0_i32_1 = arith.constant 0 : i32
    return %c0_i32, %c0_i32_0 : i32, i32
  }
  func.func @transform_7(%arg0: i32) -> (i32, i32) {
    %c0_i32 = arith.constant 0 : i32
    %c0_i32_0 = arith.constant 0 : i32
    return %c0_i32, %arg0 : i32, i32
  }
}

</mosaic_0001>

<llo_original>
// kernel: tpu_custom_call.1
$region0: #{tpu_custom_call.1}
  #allocation0 [shape = 'u32[]', space=smem, size = 0x4, offset = 0x4, fixed_abs, tag = 'smem constant byte address 0x4 - core index']
  #allocation1 [shape = 'u32[144,128]{1,0:T(1,128)}', space=vmem, size = 0x12000, scoped, tag = 'internal scratch']
  %s0 = inlined_call_operand.vmem [shape: bf16[256,16], index: 0, kind: input, shape index: {}]
  %s1 = inlined_call_operand.vmem [shape: bf16[16,256], index: 1, kind: input, shape index: {}]
  %s2 = inlined_call_operand.vmem [shape: f32[1,256], index: 2, kind: input, shape index: {}]
  %s3 = inlined_call_operand.hbm [shape: bf16[2,256,256], index: 3, kind: input, shape index: {}]
  %s4 = inlined_call_operand.vmem [shape: f32[2,1,256], index: 4, kind: input, shape index: {}]
  %s5 = inlined_call_operand.vmem [shape: bf16[2,256], index: 5, kind: input, shape index: {}]
  %s6 = inlined_call_operand.vmem [shape: f32[2,1], index: 6, kind: input, shape index: {}]
  %s7 = inlined_call_operand.hbm [shape: f32[2,256], index: 7, kind: output, shape index: {}]
  %s8 = sld [smem:[#allocation0]]
  $region65: #{tpu_custom_call.1} parent=0
    _
  %s10 = ssub.s32 1, %s8
  %s11 = scalar_select 0, %s10, %s8
  $region1: #{tpu_custom_call.1} parent=0
    #allocation2 [shape = 'u8[262144]{0}', space=vmem, size = 0x40000, scoped, tag = 'input window, operand 3, single buffered']
    #allocation3 [shape = 's32[2]{0}', space=sflag, size = 0x8, scoped, tag = 'scoped memory for tpu_custom_call.1']
    #allocation4 [shape = 's32[2]{0}', space=sflag, size = 0x8, scoped, tag = 'scoped memory for tpu_custom_call.1']
    #allocation5 [shape = 'u8[2048]{0}', space=vmem, size = 0x800, scoped, tag = 'output window, operand 0']
    %12 = vsyncpa [#allocation3], 0
    %13 = vsyncpa [#allocation4], 0
    %s14 = scalar_lea.sflag [#allocation4], 1
    %15 = vsyncpa %s14, 0
    loop: start=0, step=1, limit=4
    $region2: #{tpu_custom_call.1} parent=1 // loop_pre_header
      _
    $region3: #{tpu_custom_call.1} parent=1 // loop_header
      %s17 = sphi 0, %s21
      %p18 = scmp.ge.s32.totalorder %s17, 4
      %s27 = sphi 0, %s29
      %s30 = sphi 0, %s27
      %s31 = sphi 0, %s30
      %s47 = sphi 0, %s31
      %s51 = sphi 0, %s51
      %s53 = sphi 0, %s51
      %s54 = sphi 0, %s53
      %s68 = sphi 0, %s54
      %s72 = sphi 0, %s72
      %s74 = sphi 0, %s72
      %s75 = sphi 0, %s74
      %s89 = sphi 0, %s75
      %s93 = sphi 0, %s93
      %s95 = sphi 0, %s93
      %s96 = sphi 0, %s95
      %s110 = sphi 0, %s96
      %s114 = sphi 0, %s114
      %s116 = sphi 0, %s114
      %s117 = sphi 0, %s116
      %s131 = sphi 0, %s117
      %s135 = sphi 0, %s135
      %s137 = sphi 0, %s135
      %s138 = sphi 0, %s137
      %s152 = sphi 0, %s138
      %s156 = sphi 0, %s156
      %s158 = sphi 0, %s156
      %s159 = sphi 0, %s158
      %s173 = sphi 0, %s159
      %s179 = sphi 0, %s181
      %s182 = sphi 0, %s179
      %s183 = sphi 0, %s182
      %s199 = sphi 0, %s183
    $region4: #{tpu_custom_call.1} parent=1 // loop_header_branch
      %20 = sbr.rel (%p18) target = $region8
    $region5: #{tpu_custom_call.1} parent=1 // loop_body
      %s22 = ssub.s32 %s17, 1
      %s23 = ssub.s32 %s17, 2
      %s24 = sadd.s32 %s17, 1
      %s25 = ssub.s32 %s17, %s24
      %p26 = scmp.eq.s32.totalorder %s25, 0
      %s28 = sadd.s32 %s27, 1
      %s29 = scalar_select %p26, %s27, %s28
      %p32 = pneg %p26
      %p33 = scmp.eq.s32.totalorder %s17, 1
      %p34 = por %p32, %p33
      %p35 = scmp.ne.s32.totalorder %s27, %s30
      %p36 = scmp.eq.s32.totalorder %s17, 0
      %p37 = por %p35, %p36
      %p38 = scmp.ne.s32.totalorder %s27, %s30
      %p39 = scmp.eq.s32.totalorder %s22, 1
      %p40 = por %p38, %p39
      %p41 = scmp.ne.s32.totalorder %s30, %s31
      %p42 = scmp.eq.s32.totalorder %s22, 0
      %p43 = por %p41, %p42
      %p44 = scmp.ne.s32.totalorder %s30, %s31
      %p45 = scmp.eq.s32.totalorder %s23, 1
      %p46 = por %p44, %p45
      %p48 = scmp.ne.s32.totalorder %s31, %s47
      %p49 = scmp.eq.s32.totalorder %s23, 0
      %p50 = por %p48, %p49
      %s52 = sadd.s32 %s51, 1
      %p55 = scmp.eq.s32.totalorder %s17, 1
      %p56 = scmp.ne.s32.totalorder %s51, %s53
      %p57 = scmp.eq.s32.totalorder %s17, 0
      %p58 = por %p56, %p57
      %p59 = scmp.ne.s32.totalorder %s51, %s53
      %p60 = scmp.eq.s32.totalorder %s22, 1
      %p61 = por %p59, %p60
      %p62 = scmp.ne.s32.totalorder %s53, %s54
      %p63 = scmp.eq.s32.totalorder %s22, 0
      %p64 = por %p62, %p63
      %p65 = scmp.ne.s32.totalorder %s53, %s54
      %p66 = scmp.eq.s32.totalorder %s23, 1
      %p67 = por %p65, %p66
      %p69 = scmp.ne.s32.totalorder %s54, %s68
      %p70 = scmp.eq.s32.totalorder %s23, 0
      %p71 = por %p69, %p70
      %s73 = sadd.s32 %s72, 1
      %p76 = scmp.eq.s32.totalorder %s17, 1
      %p77 = scmp.ne.s32.totalorder %s72, %s74
      %p78 = scmp.eq.s32.totalorder %s17, 0
      %p79 = por %p77, %p78
      %p80 = scmp.ne.s32.totalorder %s72, %s74
      %p81 = scmp.eq.s32.totalorder %s22, 1
      %p82 = por %p80, %p81
      %p83 = scmp.ne.s32.totalorder %s74, %s75
      %p84 = scmp.eq.s32.totalorder %s22, 0
      %p85 = por %p83, %p84
      %p86 = scmp.ne.s32.totalorder %s74, %s75
      %p87 = scmp.eq.s32.totalorder %s23, 1
      %p88 = por %p86, %p87
      %p90 = scmp.ne.s32.totalorder %s75, %s89
      %p91 = scmp.eq.s32.totalorder %s23, 0
      %p92 = por %p90, %p91
      %s94 = sadd.s32 %s93, 1
      %p97 = scmp.eq.s32.totalorder %s17, 1
      %p98 = scmp.ne.s32.totalorder %s93, %s95
      %p99 = scmp.eq.s32.totalorder %s17, 0
      %p100 = por %p98, %p99
      %p101 = scmp.ne.s32.totalorder %s93, %s95
      %p102 = scmp.eq.s32.totalorder %s22, 1
      %p103 = por %p101, %p102
      %p104 = scmp.ne.s32.totalorder %s95, %s96
      %p105 = scmp.eq.s32.totalorder %s22, 0
      %p106 = por %p104, %p105
      %p107 = scmp.ne.s32.totalorder %s95, %s96
      %p108 = scmp.eq.s32.totalorder %s23, 1
      %p109 = por %p107, %p108
      %p111 = scmp.ne.s32.totalorder %s96, %s110
      %p112 = scmp.eq.s32.totalorder %s23, 0
      %p113 = por %p111, %p112
      %s115 = sadd.s32 %s114, 1
      %p118 = scmp.eq.s32.totalorder %s17, 1
      %p119 = scmp.ne.s32.totalorder %s114, %s116
      %p120 = scmp.eq.s32.totalorder %s17, 0
      %p121 = por %p119, %p120
      %p122 = scmp.ne.s32.totalorder %s114, %s116
      %p123 = scmp.eq.s32.totalorder %s22, 1
      %p124 = por %p122, %p123
      %p125 = scmp.ne.s32.totalorder %s116, %s117
      %p126 = scmp.eq.s32.totalorder %s22, 0
      %p127 = por %p125, %p126
      %p128 = scmp.ne.s32.totalorder %s116, %s117
      %p129 = scmp.eq.s32.totalorder %s23, 1
      %p130 = por %p128, %p129
      %p132 = scmp.ne.s32.totalorder %s117, %s131
      %p133 = scmp.eq.s32.totalorder %s23, 0
      %p134 = por %p132, %p133
      %s136 = sadd.s32 %s135, 1
      %p139 = scmp.eq.s32.totalorder %s17, 1
      %p140 = scmp.ne.s32.totalorder %s135, %s137
      %p141 = scmp.eq.s32.totalorder %s17, 0
      %p142 = por %p140, %p141
      %p143 = scmp.ne.s32.totalorder %s135, %s137
      %p144 = scmp.eq.s32.totalorder %s22, 1
      %p145 = por %p143, %p144
      %p146 = scmp.ne.s32.totalorder %s137, %s138
      %p147 = scmp.eq.s32.totalorder %s22, 0
      %p148 = por %p146, %p147
      %p149 = scmp.ne.s32.totalorder %s137, %s138
      %p150 = scmp.eq.s32.totalorder %s23, 1
      %p151 = por %p149, %p150
      %p153 = scmp.ne.s32.totalorder %s138, %s152
      %p154 = scmp.eq.s32.totalorder %s23, 0
      %p155 = por %p153, %p154
      %s157 = sadd.s32 %s156, 1
      %p160 = scmp.eq.s32.totalorder %s17, 1
      %p161 = scmp.ne.s32.totalorder %s156, %s158
      %p162 = scmp.eq.s32.totalorder %s17, 0
      %p163 = por %p161, %p162
      %p164 = scmp.ne.s32.totalorder %s156, %s158
      %p165 = scmp.eq.s32.totalorder %s22, 1
      %p166 = por %p164, %p165
      %p167 = scmp.ne.s32.totalorder %s158, %s159
      %p168 = scmp.eq.s32.totalorder %s22, 0
      %p169 = por %p167, %p168
      %p170 = scmp.ne.s32.totalorder %s158, %s159
      %p171 = scmp.eq.s32.totalorder %s23, 1
      %p172 = por %p170, %p171
      %p174 = scmp.ne.s32.totalorder %s159, %s173
      %p175 = scmp.eq.s32.totalorder %s23, 0
      %p176 = por %p174, %p175
      %s177 = ssub.s32 %s17, %s24
      %p178 = scmp.eq.s32.totalorder %s177, 0
      %s180 = sadd.s32 %s179, 1
      %s181 = scalar_select %p178, %s179, %s180
      %p184 = pneg %p178
      %p185 = scmp.eq.s32.totalorder %s17, 1
      %p186 = por %p184, %p185
      %p187 = scmp.ne.s32.totalorder %s179, %s182
      %p188 = scmp.eq.s32.totalorder %s17, 0
      %p189 = por %p187, %p188
      %p190 = scmp.ne.s32.totalorder %s179, %s182
      %p191 = scmp.eq.s32.totalorder %s22, 1
      %p192 = por %p190, %p191
      %p193 = scmp.ne.s32.totalorder %s182, %s183
      %p194 = scmp.eq.s32.totalorder %s22, 0
      %p195 = por %p193, %p194
      %p196 = scmp.ne.s32.totalorder %s182, %s183
      %p197 = scmp.eq.s32.totalorder %s23, 1
      %p198 = por %p196, %p197
      %p200 = scmp.ne.s32.totalorder %s183, %s199
      %p201 = scmp.eq.s32.totalorder %s23, 0
      %p202 = por %p200, %p201
      %p203 = scmp.le.s32.totalorder 1, %s17
      %p204 = scmp.lt.s32.totalorder %s17, 3
      %p205 = pnand %p203, %p204
      %p206 = pneg %p205
      // Predicated region
      $region9: #{tpu_custom_call.1} parent=5 // pred_check
        _
      $region10: #{tpu_custom_call.1} parent=5 // pred_check_branch
        %208 = sbr.rel (%p205) target = $region12
      $region11: #{tpu_custom_call.1} parent=5 // pred_region
        %s209 = ssub.s32 %s17, 1
        // Predicated region
        $region13: #{tpu_custom_call.1} parent=11 // pred_check
          %p210 = pneg %p64
        $region14: #{tpu_custom_call.1} parent=11 // pred_check_branch
          %212 = sbr.rel (%p210) target = $region16
        $region15: #{tpu_custom_call.1} parent=11 // pred_region
          _
        $region16: #{tpu_custom_call.1} parent=11 // pred_fallthru
          _
        // Predicated region
        $region17: #{tpu_custom_call.1} parent=11 // pred_check
          %p213 = pneg %p85
        $region18: #{tpu_custom_call.1} parent=11 // pred_check_branch
          %215 = sbr.rel (%p213) target = $region20
        $region19: #{tpu_custom_call.1} parent=11 // pred_region
          _
        $region20: #{tpu_custom_call.1} parent=11 // pred_fallthru
          _
        // Predicated region
        $region21: #{tpu_custom_call.1} parent=11 // pred_check
          %p216 = pneg %p106
        $region22: #{tpu_custom_call.1} parent=11 // pred_check_branch
          %218 = sbr.rel (%p216) target = $region24
        $region23: #{tpu_custom_call.1} parent=11 // pred_region
          %s220 = ssub.s32 8192, 8192
          %221 = vsyncadd [#allocation3], %s220
          %s222 = sshll.u32 [#allocation2], 4
          %s223 = int_to_ptr.vmem [resolvable:$true] %s222
          %228 = dma.hbm_to_vmem [thread:$0]  %s3, 8192, %s223, [#allocation3], 128, 128, 8
        $region24: #{tpu_custom_call.1} parent=11 // pred_fallthru
          _
        // Predicated region
        $region25: #{tpu_custom_call.1} parent=11 // pred_check
          %p229 = pneg %p127
        $region26: #{tpu_custom_call.1} parent=11 // pred_check_branch
          %231 = sbr.rel (%p229) target = $region28
        $region27: #{tpu_custom_call.1} parent=11 // pred_region
          _
        $region28: #{tpu_custom_call.1} parent=11 // pred_fallthru
          _
        // Predicated region
        $region29: #{tpu_custom_call.1} parent=11 // pred_check
          %p232 = pneg %p148
        $region30: #{tpu_custom_call.1} parent=11 // pred_check_branch
          %234 = sbr.rel (%p232) target = $region32
        $region31: #{tpu_custom_call.1} parent=11 // pred_region
          _
        $region32: #{tpu_custom_call.1} parent=11 // pred_fallthru
          _
        // Predicated region
        $region33: #{tpu_custom_call.1} parent=11 // pred_check
          %p235 = pneg %p169
        $region34: #{tpu_custom_call.1} parent=11 // pred_check_branch
          %237 = sbr.rel (%p235) target = $region36
        $region35: #{tpu_custom_call.1} parent=11 // pred_region
          _
        $region36: #{tpu_custom_call.1} parent=11 // pred_fallthru
          _
      $region12: #{tpu_custom_call.1} parent=5 // pred_fallthru
        _
      %p238 = scmp.lt.s32.totalorder %s17, 2
      // Predicated region
      $region37: #{tpu_custom_call.1} parent=5 // pred_check
        %p239 = pneg %p238
      $region38: #{tpu_custom_call.1} parent=5 // pred_check_branch
        %241 = sbr.rel (%p239) target = $region40
      $region39: #{tpu_custom_call.1} parent=5 // pred_region
        // Predicated region
        $region41: #{tpu_custom_call.1} parent=39 // pred_check
          %p242 = pneg %p37
        $region42: #{tpu_custom_call.1} parent=39 // pred_check_branch
          %244 = sbr.rel (%p242) target = $region44
        $region43: #{tpu_custom_call.1} parent=39 // pred_region
          %s245 = smul.u32 16, %s17
          %p246 = scmp.lt.s32.totalorder %s245, 31
          %s247 = scalar_select %p246, %s245, 31
          %s248 = smul.addr %s247, 4
          %s249 = scalar_lea.vmem %s0, %s248
          %s250 = smul.u32 16, %s17
        $region44: #{tpu_custom_call.1} parent=39 // pred_fallthru
          _
      $region40: #{tpu_custom_call.1} parent=5 // pred_fallthru
        _
      %p251 = scmp.le.s32.totalorder 1, %s17
      %p252 = scmp.lt.s32.totalorder %s17, 3
      %p253 = pnand %p251, %p252
      %p254 = pneg %p253
      // Predicated region
      $region45: #{tpu_custom_call.1} parent=5 // pred_check
        _
      $region46: #{tpu_custom_call.1} parent=5 // pred_check_branch
        %256 = sbr.rel (%p253) target = $region48
      $region47: #{tpu_custom_call.1} parent=5 // pred_region
        %s257 = ssub.s32 %s17, 1
        // Predicated region
        $region49: #{tpu_custom_call.1} parent=47 // pred_check
          %p258 = pneg %p106
        $region50: #{tpu_custom_call.1} parent=47 // pred_check_branch
          %260 = sbr.rel (%p258) target = $region52
        $region51: #{tpu_custom_call.1} parent=47 // pred_region
          %261 = dma.done [#allocation3], 8192
        $region52: #{tpu_custom_call.1} parent=47 // pred_fallthru
          _
        %s262 = smul.u32 16, %s22
        %p263 = scmp.lt.s32.totalorder %s262, 31
        %s264 = scalar_select %p263, %s262, 31
        %s265 = smul.addr %s264, 4
        %s266 = scalar_lea.vmem %s0, %s265
        %p267 = pneg %p43
        %p268 = pneg %p40
        %p269 = pneg %p64
        %p270 = pneg %p61
        %p271 = pneg %p85
        %p272 = pneg %p82
        %p273 = pneg %p106
        %p274 = pneg %p103
        %p275 = pneg %p127
        %p276 = pneg %p124
        %p277 = pneg %p148
        %p278 = pneg %p145
        %p279 = pneg %p169
        %p280 = pneg %p166
        %p281 = pneg %p195
        %p282 = pneg %p192
        %s283 = sand.u32 %s182, 1
        %s284 = scalar_lea.sflag [#allocation4], %s283
        %s285 = sand.u32 %s182, 1
        %s286 = smul.addr %s285, 2
        %s287 = scalar_lea.vmem [#allocation5], %s286
        %s288 = smul.u32 16, %s22
        %p289 = scmp.lt.s32.totalorder %s288, 31
        %s290 = scalar_select %p289, %s288, 31
        %s291 = smul.addr %s290, 4
        %s292 = scalar_lea.vmem %s0, %s291
        %s293 = smul.u32 16, %s22
        %v295 = vld [vmem:[%s292] sm:$0xf]
        %v296 = vld [vmem:[%s292 + $0x4] sm:$0xf]
        %v297 = vld [vmem:[%s292 + $0x8] sm:$0xf]
        %v298 = vld [vmem:[%s292 + $0xc] sm:$0xf]
        %v299 = vld [vmem:[%s292 + $0x10] sm:$0xf]
        %v300 = vld [vmem:[%s292 + $0x14] sm:$0xf]
        %v301 = vld [vmem:[%s292 + $0x18] sm:$0xf]
        %v302 = vld [vmem:[%s292 + $0x1c] sm:$0xf]
        %v303 = vld [vmem:[%s292 + $0x20] sm:$0xf]
        %v304 = vld [vmem:[%s292 + $0x24] sm:$0xf]
        %v305 = vld [vmem:[%s292 + $0x28] sm:$0xf]
        %v306 = vld [vmem:[%s292 + $0x2c] sm:$0xf]
        %v307 = vld [vmem:[%s292 + $0x30] sm:$0xf]
        %v308 = vld [vmem:[%s292 + $0x34] sm:$0xf]
        %v309 = vld [vmem:[%s292 + $0x38] sm:$0xf]
        %v310 = vld [vmem:[%s292 + $0x3c] sm:$0xf]
        %v311 = vld [vmem:[%s1] sm:$0xff]
        %v312 = vld [vmem:[%s1 + $0x8] sm:$0xff]
        %v313 = vld [vmem:[%s2] sm:$0x3]
        %v315 = vlaneseq
        %v316 = vshrl.u32 %v315, 7
        %v317 = vsub.s32 0, %v316
        %v318 = vrot.slane %v313, %v317
        %v319 = vlaneseq
        %v320 = vshrl.u32 %v319, 7
        %v321 = vsub.s32 1, %v320
        %v322 = vrot.slane %v313, %v321
        %v341 = vunpack.c.l.b16 %v295
        %v342 = vunpack.c.l.b16 %v296
        %v343 = vunpack.c.l.b16 %v297
        %v344 = vunpack.c.l.b16 %v298
        %v345 = vunpack.c.l.b16 %v299
        %v346 = vunpack.c.l.b16 %v300
        %v347 = vunpack.c.l.b16 %v301
        %v348 = vunpack.c.l.b16 %v302
        %v349 = vunpack.c.l.b16 %v303
        %v350 = vunpack.c.l.b16 %v304
        %v351 = vunpack.c.l.b16 %v305
        %v352 = vunpack.c.l.b16 %v306
        %v353 = vunpack.c.l.b16 %v307
        %v354 = vunpack.c.l.b16 %v308
        %v355 = vunpack.c.l.b16 %v309
        %v356 = vunpack.c.l.b16 %v310
        %v357 = vpack.c.b16 %v342, %v341
        %v358 = vpack.c.b16 %v344, %v343
        %v359 = vpack.c.b16 %v346, %v345
        %v360 = vpack.c.b16 %v348, %v347
        %v361 = vpack.c.b16 %v350, %v349
        %v362 = vpack.c.b16 %v352, %v351
        %v363 = vpack.c.b16 %v354, %v353
        %v364 = vpack.c.b16 %v356, %v355
        %v367 = vunpack.c.l.b16 %v311
        %v368 = vunpack.c.h.b16 %v311
        %v369 = vunpack.c.l.b16 %v312
        %v370 = vunpack.c.h.b16 %v312
        %v371 = vpack.c.b16 %v369, %v367
        %v372 = vpack.c.b16 %v370, %v368
        %vm375 = vcmask 130048
        %v377 = vsel %vm375, %v357, 0
        %v380 = vsel %vm375, %v358, 0
        %v383 = vsel %vm375, %v359, 0
        %v386 = vsel %vm375, %v360, 0
        %v389 = vsel %vm375, %v361, 0
        %v392 = vsel %vm375, %v362, 0
        %v395 = vsel %vm375, %v363, 0
        %v398 = vsel %vm375, %v364, 0
        %400 = vmatprep.subr.bf16.mxu0 0
        %401 = vmatpush1.bf16.msra.mxu0 0
        %402 = vmatprep.subr.bf16.mxu0 0
        %403 = vmatpush1.bf16.msra.mxu0 0
        %404 = vmatprep.subr.bf16.mxu0 0
        %405 = vmatpush1.bf16.msra.mxu0 0
        %406 = vmatprep.subr.bf16.mxu0 0
        %407 = vmatpush1.bf16.msra.mxu0 0
        %408 = vmatprep.subr.bf16.mxu0 0
        %409 = vmatpush1.bf16.msra.mxu0 0
        %410 = vmatprep.subr.bf16.mxu0 0
        %411 = vmatpush1.bf16.msra.mxu0 0
        %412 = vmatprep.subr.bf16.mxu0 0
        %413 = vmatpush1.bf16.msra.mxu0 0
        %414 = vmatprep.subr.bf16.mxu0 %v372
        %415 = vmatpush1.bf16.msra.mxu0 %v371
        %416 = vmatprep.subr.bf16.mxu0 0
        %417 = vmatpush2.bf16.msra.mxu0 0
        %418 = vmatprep.subr.bf16.mxu0 0
        %419 = vmatpush2.bf16.msra.mxu0 0
        %420 = vmatprep.subr.bf16.mxu0 0
        %421 = vmatpush2.bf16.msra.mxu0 0
        %422 = vmatprep.subr.bf16.mxu0 0
        %423 = vmatpush2.bf16.msra.mxu0 0
        %424 = vmatprep.subr.bf16.mxu0 0
        %425 = vmatpush2.bf16.msra.mxu0 0
        %426 = vmatprep.subr.bf16.mxu0 0
        %427 = vmatpush2.bf16.msra.mxu0 0
        %428 = vmatprep.subr.bf16.mxu0 0
        %429 = vmatpush2.bf16.msra.mxu0 0
        %430 = vmatprep.subr.bf16.mxu0 0
        %431 = vmatpush2.bf16.msra.mxu0 0
        %432 = vmatprep.mubr.bf16.mxu0 0
        %433 = vmatmul.mubr.bf16.gmra.mxu0 %v377
        %v434 = vpop.f32.mrf.mxu0
        %v435 = vadd.f32 %v318, %v434
        %v436 = vpop.f32.mrf.mxu0
        %v437 = vadd.f32 %v322, %v436
        %v438 = vpop.f32.mrf.mxu0
        %v439 = vadd.f32 %v318, %v438
        %v440 = vpop.f32.mrf.mxu0
        %v441 = vadd.f32 %v322, %v440
        %442 = vmatprep.mubr.bf16.mxu0 0
        %443 = vmatmul.mubr.bf16.gmra.mxu0 %v380
        %v444 = vpop.f32.mrf.mxu0
        %v445 = vadd.f32 %v318, %v444
        %v446 = vpop.f32.mrf.mxu0
        %v447 = vadd.f32 %v322, %v446
        %v448 = vpop.f32.mrf.mxu0
        %v449 = vadd.f32 %v318, %v448
        %v450 = vpop.f32.mrf.mxu0
        %v451 = vadd.f32 %v322, %v450
        %452 = vmatprep.mubr.bf16.mxu0 0
        %453 = vmatmul.mubr.bf16.gmra.mxu0 %v383
        %v454 = vpop.f32.mrf.mxu0
        %v455 = vadd.f32 %v318, %v454
        %v456 = vpop.f32.mrf.mxu0
        %v457 = vadd.f32 %v322, %v456
        %v458 = vpop.f32.mrf.mxu0
        %v459 = vadd.f32 %v318, %v458
        %v460 = vpop.f32.mrf.mxu0
        %v461 = vadd.f32 %v322, %v460
        %462 = vmatprep.mubr.bf16.mxu0 0
        %463 = vmatmul.mubr.bf16.gmra.mxu0 %v386
        %v464 = vpop.f32.mrf.mxu0
        %v465 = vadd.f32 %v318, %v464
        %v466 = vpop.f32.mrf.mxu0
        %v467 = vadd.f32 %v322, %v466
        %v468 = vpop.f32.mrf.mxu0
        %v469 = vadd.f32 %v318, %v468
        %v470 = vpop.f32.mrf.mxu0
        %v471 = vadd.f32 %v322, %v470
        %472 = vmatprep.mubr.bf16.mxu0 0
        %473 = vmatmul.mubr.bf16.gmra.mxu0 %v389
        %v474 = vpop.f32.mrf.mxu0
        %v475 = vadd.f32 %v318, %v474
        %v476 = vpop.f32.mrf.mxu0
        %v477 = vadd.f32 %v322, %v476
        %v478 = vpop.f32.mrf.mxu0
        %v479 = vadd.f32 %v318, %v478
        %v480 = vpop.f32.mrf.mxu0
        %v481 = vadd.f32 %v322, %v480
        %482 = vmatprep.mubr.bf16.mxu0 0
        %483 = vmatmul.mubr.bf16.gmra.mxu0 %v392
        %v484 = vpop.f32.mrf.mxu0
        %v485 = vadd.f32 %v318, %v484
        %v486 = vpop.f32.mrf.mxu0
        %v487 = vadd.f32 %v322, %v486
        %v488 = vpop.f32.mrf.mxu0
        %v489 = vadd.f32 %v318, %v488
        %v490 = vpop.f32.mrf.mxu0
        %v491 = vadd.f32 %v322, %v490
        %492 = vmatprep.mubr.bf16.mxu0 0
        %493 = vmatmul.mubr.bf16.gmra.mxu0 %v395
        %v494 = vpop.f32.mrf.mxu0
        %v495 = vadd.f32 %v318, %v494
        %v496 = vpop.f32.mrf.mxu0
        %v497 = vadd.f32 %v322, %v496
        %v498 = vpop.f32.mrf.mxu0
        %v499 = vadd.f32 %v318, %v498
        %v500 = vpop.f32.mrf.mxu0
        %v501 = vadd.f32 %v322, %v500
        %502 = vmatprep.mubr.bf16.mxu0 0
        %503 = vmatmul.mubr.bf16.gmra.mxu0 %v398
        %v504 = vpop.f32.mrf.mxu0
        %v505 = vadd.f32 %v318, %v504
        %v506 = vpop.f32.mrf.mxu0
        %v507 = vadd.f32 %v322, %v506
        %v508 = vpop.f32.mrf.mxu0
        %v509 = vadd.f32 %v318, %v508
        %v510 = vpop.f32.mrf.mxu0
        %v511 = vadd.f32 %v322, %v510
        %512 = vdwg.mxu0
        %v513 = vmin.f32 %v435, 20.0
        %v514 = vmin.f32 %v437, 20.0
        %v515 = vmin.f32 %v439, 20.0
        %v516 = vmin.f32 %v441, 20.0
        %v517 = vmin.f32 %v445, 20.0
        %v518 = vmin.f32 %v447, 20.0
        %v519 = vmin.f32 %v449, 20.0
        %v520 = vmin.f32 %v451, 20.0
        %v521 = vmin.f32 %v455, 20.0
        %v522 = vmin.f32 %v457, 20.0
        %v523 = vmin.f32 %v459, 20.0
        %v524 = vmin.f32 %v461, 20.0
        %v525 = vmin.f32 %v465, 20.0
        %v526 = vmin.f32 %v467, 20.0
        %v527 = vmin.f32 %v469, 20.0
        %v528 = vmin.f32 %v471, 20.0
        %v529 = vmin.f32 %v475, 20.0
        %v530 = vmin.f32 %v477, 20.0
        %v531 = vmin.f32 %v479, 20.0
        %v532 = vmin.f32 %v481, 20.0
        %v533 = vmin.f32 %v485, 20.0
        %v534 = vmin.f32 %v487, 20.0
        %v535 = vmin.f32 %v489, 20.0
        %v536 = vmin.f32 %v491, 20.0
        %v537 = vmin.f32 %v495, 20.0
        %v538 = vmin.f32 %v497, 20.0
        %v539 = vmin.f32 %v499, 20.0
        %v540 = vmin.f32 %v501, 20.0
        %v541 = vmin.f32 %v505, 20.0
        %v542 = vmin.f32 %v507, 20.0
        %v543 = vmin.f32 %v509, 20.0
        %v544 = vmin.f32 %v511, 20.0
        %v545 = vmul.f32 %v513, 1.442695
        %v546 = vpow.pop %v545
        %v547 = vmul.f32 %v514, 1.442695
        %v548 = vpow.pop %v547
        %v549 = vmul.f32 %v515, 1.442695
        %v550 = vpow.pop %v549
        %v551 = vmul.f32 %v516, 1.442695
        %v552 = vpow.pop %v551
        %v553 = vmul.f32 %v517, 1.442695
        %v554 = vpow.pop %v553
        %v555 = vmul.f32 %v518, 1.442695
        %v556 = vpow.pop %v555
        %v557 = vmul.f32 %v519, 1.442695
        %v558 = vpow.pop %v557
        %v559 = vmul.f32 %v520, 1.442695
        %v560 = vpow.pop %v559
        %v561 = vmul.f32 %v521, 1.442695
        %v562 = vpow.pop %v561
        %v563 = vmul.f32 %v522, 1.442695
        %v564 = vpow.pop %v563
        %v565 = vmul.f32 %v523, 1.442695
        %v566 = vpow.pop %v565
        %v567 = vmul.f32 %v524, 1.442695
        %v568 = vpow.pop %v567
        %v569 = vmul.f32 %v525, 1.442695
        %v570 = vpow.pop %v569
        %v571 = vmul.f32 %v526, 1.442695
        %v572 = vpow.pop %v571
        %v573 = vmul.f32 %v527, 1.442695
        %v574 = vpow.pop %v573
        %v575 = vmul.f32 %v528, 1.442695
        %v576 = vpow.pop %v575
        %v577 = vmul.f32 %v529, 1.442695
        %v578 = vpow.pop %v577
        %v579 = vmul.f32 %v530, 1.442695
        %v580 = vpow.pop %v579
        %v581 = vmul.f32 %v531, 1.442695
        %v582 = vpow.pop %v581
        %v583 = vmul.f32 %v532, 1.442695
        %v584 = vpow.pop %v583
        %v585 = vmul.f32 %v533, 1.442695
        %v586 = vpow.pop %v585
        %v587 = vmul.f32 %v534, 1.442695
        %v588 = vpow.pop %v587
        %v589 = vmul.f32 %v535, 1.442695
        %v590 = vpow.pop %v589
        %v591 = vmul.f32 %v536, 1.442695
        %v592 = vpow.pop %v591
        %v593 = vmul.f32 %v537, 1.442695
        %v594 = vpow.pop %v593
        %v595 = vmul.f32 %v538, 1.442695
        %v596 = vpow.pop %v595
        %v597 = vmul.f32 %v539, 1.442695
        %v598 = vpow.pop %v597
        %v599 = vmul.f32 %v540, 1.442695
        %v600 = vpow.pop %v599
        %v601 = vmul.f32 %v541, 1.442695
        %v602 = vpow.pop %v601
        %v603 = vmul.f32 %v542, 1.442695
        %v604 = vpow.pop %v603
        %v605 = vmul.f32 %v543, 1.442695
        %v606 = vpow.pop %v605
        %v607 = vmul.f32 %v544, 1.442695
        %v608 = vpow.pop %v607
        %v609 = vadd.f32 %v546, 2.0
        %v610 = vadd.f32 %v548, 2.0
        %v611 = vadd.f32 %v550, 2.0
        %v612 = vadd.f32 %v552, 2.0
        %v613 = vadd.f32 %v554, 2.0
        %v614 = vadd.f32 %v556, 2.0
        %v615 = vadd.f32 %v558, 2.0
        %v616 = vadd.f32 %v560, 2.0
        %v617 = vadd.f32 %v562, 2.0
        %v618 = vadd.f32 %v564, 2.0
        %v619 = vadd.f32 %v566, 2.0
        %v620 = vadd.f32 %v568, 2.0
        %v621 = vadd.f32 %v570, 2.0
        %v622 = vadd.f32 %v572, 2.0
        %v623 = vadd.f32 %v574, 2.0
        %v624 = vadd.f32 %v576, 2.0
        %v625 = vadd.f32 %v578, 2.0
        %v626 = vadd.f32 %v580, 2.0
        %v627 = vadd.f32 %v582, 2.0
        %v628 = vadd.f32 %v584, 2.0
        %v629 = vadd.f32 %v586, 2.0
        %v630 = vadd.f32 %v588, 2.0
        %v631 = vadd.f32 %v590, 2.0
        %v632 = vadd.f32 %v592, 2.0
        %v633 = vadd.f32 %v594, 2.0
        %v634 = vadd.f32 %v596, 2.0
        %v635 = vadd.f32 %v598, 2.0
        %v636 = vadd.f32 %v600, 2.0
        %v637 = vadd.f32 %v602, 2.0
        %v638 = vadd.f32 %v604, 2.0
        %v639 = vadd.f32 %v606, 2.0
        %v640 = vadd.f32 %v608, 2.0
        %v641 = vmul.f32 %v546, %v609
        %v642 = vmul.f32 %v548, %v610
        %v643 = vmul.f32 %v550, %v611
        %v644 = vmul.f32 %v552, %v612
        %v645 = vmul.f32 %v554, %v613
        %v646 = vmul.f32 %v556, %v614
        %v647 = vmul.f32 %v558, %v615
        %v648 = vmul.f32 %v560, %v616
        %v649 = vmul.f32 %v562, %v617
        %v650 = vmul.f32 %v564, %v618
        %v651 = vmul.f32 %v566, %v619
        %v652 = vmul.f32 %v568, %v620
        %v653 = vmul.f32 %v570, %v621
        %v654 = vmul.f32 %v572, %v622
        %v655 = vmul.f32 %v574, %v623
        %v656 = vmul.f32 %v576, %v624
        %v657 = vmul.f32 %v578, %v625
        %v658 = vmul.f32 %v580, %v626
        %v659 = vmul.f32 %v582, %v627
        %v660 = vmul.f32 %v584, %v628
        %v661 = vmul.f32 %v586, %v629
        %v662 = vmul.f32 %v588, %v630
        %v663 = vmul.f32 %v590, %v631
        %v664 = vmul.f32 %v592, %v632
        %v665 = vmul.f32 %v594, %v633
        %v666 = vmul.f32 %v596, %v634
        %v667 = vmul.f32 %v598, %v635
        %v668 = vmul.f32 %v600, %v636
        %v669 = vmul.f32 %v602, %v637
        %v670 = vmul.f32 %v604, %v638
        %v671 = vmul.f32 %v606, %v639
        %v672 = vmul.f32 %v608, %v640
        %v673 = vmul.f32 %v435, %v641
        %v674 = vmul.f32 %v437, %v642
        %v675 = vmul.f32 %v439, %v643
        %v676 = vmul.f32 %v441, %v644
        %v677 = vmul.f32 %v445, %v645
        %v678 = vmul.f32 %v447, %v646
        %v679 = vmul.f32 %v449, %v647
        %v680 = vmul.f32 %v451, %v648
        %v681 = vmul.f32 %v455, %v649
        %v682 = vmul.f32 %v457, %v650
        %v683 = vmul.f32 %v459, %v651
        %v684 = vmul.f32 %v461, %v652
        %v685 = vmul.f32 %v465, %v653
        %v686 = vmul.f32 %v467, %v654
        %v687 = vmul.f32 %v469, %v655
        %v688 = vmul.f32 %v471, %v656
        %v689 = vmul.f32 %v475, %v657
        %v690 = vmul.f32 %v477, %v658
        %v691 = vmul.f32 %v479, %v659
        %v692 = vmul.f32 %v481, %v660
        %v693 = vmul.f32 %v485, %v661
        %v694 = vmul.f32 %v487, %v662
        %v695 = vmul.f32 %v489, %v663
        %v696 = vmul.f32 %v491, %v664
        %v697 = vmul.f32 %v495, %v665
        %v698 = vmul.f32 %v497, %v666
        %v699 = vmul.f32 %v499, %v667
        %v700 = vmul.f32 %v501, %v668
        %v701 = vmul.f32 %v505, %v669
        %v702 = vmul.f32 %v507, %v670
        %v703 = vmul.f32 %v509, %v671
        %v704 = vmul.f32 %v511, %v672
        %v705 = vadd.f32 %v641, 2.0
        %v706 = vadd.f32 %v642, 2.0
        %v707 = vadd.f32 %v643, 2.0
        %v708 = vadd.f32 %v644, 2.0
        %v709 = vadd.f32 %v645, 2.0
        %v710 = vadd.f32 %v646, 2.0
        %v711 = vadd.f32 %v647, 2.0
        %v712 = vadd.f32 %v648, 2.0
        %v713 = vadd.f32 %v649, 2.0
        %v714 = vadd.f32 %v650, 2.0
        %v715 = vadd.f32 %v651, 2.0
        %v716 = vadd.f32 %v652, 2.0
        %v717 = vadd.f32 %v653, 2.0
        %v718 = vadd.f32 %v654, 2.0
        %v719 = vadd.f32 %v655, 2.0
        %v720 = vadd.f32 %v656, 2.0
        %v721 = vadd.f32 %v657, 2.0
        %v722 = vadd.f32 %v658, 2.0
        %v723 = vadd.f32 %v659, 2.0
        %v724 = vadd.f32 %v660, 2.0
        %v725 = vadd.f32 %v661, 2.0
        %v726 = vadd.f32 %v662, 2.0
        %v727 = vadd.f32 %v663, 2.0
        %v728 = vadd.f32 %v664, 2.0
        %v729 = vadd.f32 %v665, 2.0
        %v730 = vadd.f32 %v666, 2.0
        %v731 = vadd.f32 %v667, 2.0
        %v732 = vadd.f32 %v668, 2.0
        %v733 = vadd.f32 %v669, 2.0
        %v734 = vadd.f32 %v670, 2.0
        %v735 = vadd.f32 %v671, 2.0
        %v736 = vadd.f32 %v672, 2.0
        %v737 = vrcp.pop %v705
        %v738 = vrcp.pop %v706
        %v739 = vrcp.pop %v707
        %v740 = vrcp.pop %v708
        %v741 = vrcp.pop %v709
        %v742 = vrcp.pop %v710
        %v743 = vrcp.pop %v711
        %v744 = vrcp.pop %v712
        %v745 = vrcp.pop %v713
        %v746 = vrcp.pop %v714
        %v747 = vrcp.pop %v715
        %v748 = vrcp.pop %v716
        %v749 = vrcp.pop %v717
        %v750 = vrcp.pop %v718
        %v751 = vrcp.pop %v719
        %v752 = vrcp.pop %v720
        %v753 = vrcp.pop %v721
        %v754 = vrcp.pop %v722
        %v755 = vrcp.pop %v723
        %v756 = vrcp.pop %v724
        %v757 = vrcp.pop %v725
        %v758 = vrcp.pop %v726
        %v759 = vrcp.pop %v727
        %v760 = vrcp.pop %v728
        %v761 = vrcp.pop %v729
        %v762 = vrcp.pop %v730
        %v763 = vrcp.pop %v731
        %v764 = vrcp.pop %v732
        %v765 = vrcp.pop %v733
        %v766 = vrcp.pop %v734
        %v767 = vrcp.pop %v735
        %v768 = vrcp.pop %v736
        %v769 = vmul.f32 %v673, %v737
        %v770 = vmul.f32 %v674, %v738
        %v771 = vmul.f32 %v675, %v739
        %v772 = vmul.f32 %v676, %v740
        %v773 = vmul.f32 %v677, %v741
        %v774 = vmul.f32 %v678, %v742
        %v775 = vmul.f32 %v679, %v743
        %v776 = vmul.f32 %v680, %v744
        %v777 = vmul.f32 %v681, %v745
        %v778 = vmul.f32 %v682, %v746
        %v779 = vmul.f32 %v683, %v747
        %v780 = vmul.f32 %v684, %v748
        %v781 = vmul.f32 %v685, %v749
        %v782 = vmul.f32 %v686, %v750
        %v783 = vmul.f32 %v687, %v751
        %v784 = vmul.f32 %v688, %v752
        %v785 = vmul.f32 %v689, %v753
        %v786 = vmul.f32 %v690, %v754
        %v787 = vmul.f32 %v691, %v755
        %v788 = vmul.f32 %v692, %v756
        %v789 = vmul.f32 %v693, %v757
        %v790 = vmul.f32 %v694, %v758
        %v791 = vmul.f32 %v695, %v759
        %v792 = vmul.f32 %v696, %v760
        %v793 = vmul.f32 %v697, %v761
        %v794 = vmul.f32 %v698, %v762
        %v795 = vmul.f32 %v699, %v763
        %v796 = vmul.f32 %v700, %v764
        %v797 = vmul.f32 %v701, %v765
        %v798 = vmul.f32 %v702, %v766
        %v799 = vmul.f32 %v703, %v767
        %v800 = vmul.f32 %v704, %v768
        %v801 = vpack.c.bf16 %v771, %v769
        %v802 = vpack.c.bf16 %v772, %v770
        %v803 = vpack.c.bf16 %v775, %v773
        %v804 = vpack.c.bf16 %v776, %v774
        %v805 = vpack.c.bf16 %v779, %v777
        %v806 = vpack.c.bf16 %v780, %v778
        %v807 = vpack.c.bf16 %v783, %v781
        %v808 = vpack.c.bf16 %v784, %v782
        %v809 = vpack.c.bf16 %v787, %v785
        %v810 = vpack.c.bf16 %v788, %v786
        %v811 = vpack.c.bf16 %v791, %v789
        %v812 = vpack.c.bf16 %v792, %v790
        %v813 = vpack.c.bf16 %v795, %v793
        %v814 = vpack.c.bf16 %v796, %v794
        %v815 = vpack.c.bf16 %v799, %v797
        %v816 = vpack.c.bf16 %v800, %v798
        %v817 = vld [vmem:[#allocation2] sm:$0xff]
        %v818 = vld [vmem:[#allocation2 + $0x8] sm:$0xff]
        %v819 = vld [vmem:[#allocation2 + $0x10] sm:$0xff]
        %v820 = vld [vmem:[#allocation2 + $0x18] sm:$0xff]
        %v821 = vld [vmem:[#allocation2 + $0x20] sm:$0xff]
        %v822 = vld [vmem:[#allocation2 + $0x28] sm:$0xff]
        %v823 = vld [vmem:[#allocation2 + $0x30] sm:$0xff]
        %v824 = vld [vmem:[#allocation2 + $0x38] sm:$0xff]
        %v825 = vld [vmem:[#allocation2 + $0x40] sm:$0xff]
        %v826 = vld [vmem:[#allocation2 + $0x48] sm:$0xff]
        %v827 = vld [vmem:[#allocation2 + $0x50] sm:$0xff]
        %v828 = vld [vmem:[#allocation2 + $0x58] sm:$0xff]
        %v829 = vld [vmem:[#allocation2 + $0x60] sm:$0xff]
        %v830 = vld [vmem:[#allocation2 + $0x68] sm:$0xff]
        %v831 = vld [vmem:[#allocation2 + $0x70] sm:$0xff]
        %v832 = vld [vmem:[#allocation2 + $0x78] sm:$0xff]
        %v833 = vld [vmem:[#allocation2 + $0x80] sm:$0xff]
        %v834 = vld [vmem:[#allocation2 + $0x88] sm:$0xff]
        %v835 = vld [vmem:[#allocation2 + $0x90] sm:$0xff]
        %v836 = vld [vmem:[#allocation2 + $0x98] sm:$0xff]
        %v837 = vld [vmem:[#allocation2 + $0xa0] sm:$0xff]
        %v838 = vld [vmem:[#allocation2 + $0xa8] sm:$0xff]
        %v839 = vld [vmem:[#allocation2 + $0xb0] sm:$0xff]
        %v840 = vld [vmem:[#allocation2 + $0xb8] sm:$0xff]
        %v841 = vld [vmem:[#allocation2 + $0xc0] sm:$0xff]
        %v842 = vld [vmem:[#allocation2 + $0xc8] sm:$0xff]
        %v843 = vld [vmem:[#allocation2 + $0xd0] sm:$0xff]
        %v844 = vld [vmem:[#allocation2 + $0xd8] sm:$0xff]
        %v845 = vld [vmem:[#allocation2 + $0xe0] sm:$0xff]
        %v846 = vld [vmem:[#allocation2 + $0xe8] sm:$0xff]
        %v847 = vld [vmem:[#allocation2 + $0xf0] sm:$0xff]
        %v848 = vld [vmem:[#allocation2 + $0xf8] sm:$0xff]
        %v849 = vld [vmem:[%s4] sm:$0x3]
        %v851 = vlaneseq
        %v852 = vshrl.u32 %v851, 7
        %v853 = vsub.s32 0, %v852
        %v854 = vrot.slane %v849, %v853
        %v855 = vlaneseq
        %v856 = vshrl.u32 %v855, 7
        %v857 = vsub.s32 1, %v856
        %v858 = vrot.slane %v849, %v857
        %v893 = vunpack.c.l.b16 %v817
        %v894 = vunpack.c.h.b16 %v817
        %v895 = vunpack.c.l.b16 %v818
        %v896 = vunpack.c.h.b16 %v818
        %v897 = vunpack.c.l.b16 %v819
        %v898 = vunpack.c.h.b16 %v819
        %v899 = vunpack.c.l.b16 %v820
        %v900 = vunpack.c.h.b16 %v820
        %v901 = vunpack.c.l.b16 %v821
        %v902 = vunpack.c.h.b16 %v821
        %v903 = vunpack.c.l.b16 %v822
        %v904 = vunpack.c.h.b16 %v822
        %v905 = vunpack.c.l.b16 %v823
        %v906 = vunpack.c.h.b16 %v823
        %v907 = vunpack.c.l.b16 %v824
        %v908 = vunpack.c.h.b16 %v824
        %v909 = vunpack.c.l.b16 %v825
        %v910 = vunpack.c.h.b16 %v825
        %v911 = vunpack.c.l.b16 %v826
        %v912 = vunpack.c.h.b16 %v826
        %v913 = vunpack.c.l.b16 %v827
        %v914 = vunpack.c.h.b16 %v827
        %v915 = vunpack.c.l.b16 %v828
        %v916 = vunpack.c.h.b16 %v828
        %v917 = vunpack.c.l.b16 %v829
        %v918 = vunpack.c.h.b16 %v829
        %v919 = vunpack.c.l.b16 %v830
        %v920 = vunpack.c.h.b16 %v830
        %v921 = vunpack.c.l.b16 %v831
        %v922 = vunpack.c.h.b16 %v831
        %v923 = vunpack.c.l.b16 %v832
        %v924 = vunpack.c.h.b16 %v832
        %v925 = vunpack.c.l.b16 %v833
        %v926 = vunpack.c.h.b16 %v833
        %v927 = vunpack.c.l.b16 %v834
        %v928 = vunpack.c.h.b16 %v834
        %v929 = vunpack.c.l.b16 %v835
        %v930 = vunpack.c.h.b16 %v835
        %v931 = vunpack.c.l.b16 %v836
        %v932 = vunpack.c.h.b16 %v836
        %v933 = vunpack.c.l.b16 %v837
        %v934 = vunpack.c.h.b16 %v837
        %v935 = vunpack.c.l.b16 %v838
        %v936 = vunpack.c.h.b16 %v838
        %v937 = vunpack.c.l.b16 %v839
        %v938 = vunpack.c.h.b16 %v839
        %v939 = vunpack.c.l.b16 %v840
        %v940 = vunpack.c.h.b16 %v840
        %v941 = vunpack.c.l.b16 %v841
        %v942 = vunpack.c.h.b16 %v841
        %v943 = vunpack.c.l.b16 %v842
        %v944 = vunpack.c.h.b16 %v842
        %v945 = vunpack.c.l.b16 %v843
        %v946 = vunpack.c.h.b16 %v843
        %v947 = vunpack.c.l.b16 %v844
        %v948 = vunpack.c.h.b16 %v844
        %v949 = vunpack.c.l.b16 %v845
        %v950 = vunpack.c.h.b16 %v845
        %v951 = vunpack.c.l.b16 %v846
        %v952 = vunpack.c.h.b16 %v846
        %v953 = vunpack.c.l.b16 %v847
        %v954 = vunpack.c.h.b16 %v847
        %v955 = vunpack.c.l.b16 %v848
        %v956 = vunpack.c.h.b16 %v848
        %v957 = vpack.c.b16 %v895, %v893
        %v958 = vpack.c.b16 %v896, %v894
        %v959 = vpack.c.b16 %v899, %v897
        %v960 = vpack.c.b16 %v900, %v898
        %v961 = vpack.c.b16 %v903, %v901
        %v962 = vpack.c.b16 %v904, %v902
        %v963 = vpack.c.b16 %v907, %v905
        %v964 = vpack.c.b16 %v908, %v906
        %v965 = vpack.c.b16 %v911, %v909
        %v966 = vpack.c.b16 %v912, %v910
        %v967 = vpack.c.b16 %v915, %v913
        %v968 = vpack.c.b16 %v916, %v914
        %v969 = vpack.c.b16 %v919, %v917
        %v970 = vpack.c.b16 %v920, %v918
        %v971 = vpack.c.b16 %v923, %v921
        %v972 = vpack.c.b16 %v924, %v922
        %v973 = vpack.c.b16 %v927, %v925
        %v974 = vpack.c.b16 %v928, %v926
        %v975 = vpack.c.b16 %v931, %v929
        %v976 = vpack.c.b16 %v932, %v930
        %v977 = vpack.c.b16 %v935, %v933
        %v978 = vpack.c.b16 %v936, %v934
        %v979 = vpack.c.b16 %v939, %v937
        %v980 = vpack.c.b16 %v940, %v938
        %v981 = vpack.c.b16 %v943, %v941
        %v982 = vpack.c.b16 %v944, %v942
        %v983 = vpack.c.b16 %v947, %v945
        %v984 = vpack.c.b16 %v948, %v946
        %v985 = vpack.c.b16 %v951, %v949
        %v986 = vpack.c.b16 %v952, %v950
        %v987 = vpack.c.b16 %v955, %v953
        %v988 = vpack.c.b16 %v956, %v954
        %1021 = vmatprep.subr.bf16.mxu0 %v972
        %1022 = vmatpush1.bf16.msra.mxu0 %v971
        %1023 = vmatprep.subr.bf16.mxu0 %v970
        %1024 = vmatpush1.bf16.msra.mxu0 %v969
        %1025 = vmatprep.subr.bf16.mxu0 %v968
        %1026 = vmatpush1.bf16.msra.mxu0 %v967
        %1027 = vmatprep.subr.bf16.mxu0 %v966
        %1028 = vmatpush1.bf16.msra.mxu0 %v965
        %1029 = vmatprep.subr.bf16.mxu0 %v964
        %1030 = vmatpush1.bf16.msra.mxu0 %v963
        %1031 = vmatprep.subr.bf16.mxu0 %v962
        %1032 = vmatpush1.bf16.msra.mxu0 %v961
        %1033 = vmatprep.subr.bf16.mxu0 %v960
        %1034 = vmatpush1.bf16.msra.mxu0 %v959
        %1035 = vmatprep.subr.bf16.mxu0 %v958
        %1036 = vmatpush1.bf16.msra.mxu0 %v957
        %1037 = vmatprep.subr.bf16.mxu0 %v988
        %1038 = vmatpush2.bf16.msra.mxu0 %v987
        %1039 = vmatprep.subr.bf16.mxu0 %v986
        %1040 = vmatpush2.bf16.msra.mxu0 %v985
        %1041 = vmatprep.subr.bf16.mxu0 %v984
        %1042 = vmatpush2.bf16.msra.mxu0 %v983
        %1043 = vmatprep.subr.bf16.mxu0 %v982
        %1044 = vmatpush2.bf16.msra.mxu0 %v981
        %1045 = vmatprep.subr.bf16.mxu0 %v980
        %1046 = vmatpush2.bf16.msra.mxu0 %v979
        %1047 = vmatprep.subr.bf16.mxu0 %v978
        %1048 = vmatpush2.bf16.msra.mxu0 %v977
        %1049 = vmatprep.subr.bf16.mxu0 %v976
        %1050 = vmatpush2.bf16.msra.mxu0 %v975
        %1051 = vmatprep.subr.bf16.mxu0 %v974
        %1052 = vmatpush2.bf16.msra.mxu0 %v973
        %1053 = vmatprep.mubr.bf16.mxu0 %v802
        %1054 = vmatmul.mubr.bf16.gmra.mxu0 %v801
        %v1055 = vpop.f32.mrf.mxu0
        %v1056 = vadd.f32 %v854, %v1055
        %v1057 = vpop.f32.mrf.mxu0
        %v1058 = vadd.f32 %v858, %v1057
        %v1059 = vpop.f32.mrf.mxu0
        %v1060 = vadd.f32 %v854, %v1059
        %v1061 = vpop.f32.mrf.mxu0
        %v1062 = vadd.f32 %v858, %v1061
        %1063 = vmatprep.mubr.bf16.mxu0 %v804
        %1064 = vmatmul.mubr.bf16.gmra.mxu0 %v803
        %v1065 = vpop.f32.mrf.mxu0
        %v1066 = vadd.f32 %v854, %v1065
        %v1067 = vpop.f32.mrf.mxu0
        %v1068 = vadd.f32 %v858, %v1067
        %v1069 = vpop.f32.mrf.mxu0
        %v1070 = vadd.f32 %v854, %v1069
        %v1071 = vpop.f32.mrf.mxu0
        %v1072 = vadd.f32 %v858, %v1071
        %1073 = vmatprep.mubr.bf16.mxu0 %v806
        %1074 = vmatmul.mubr.bf16.gmra.mxu0 %v805
        %v1075 = vpop.f32.mrf.mxu0
        %v1076 = vadd.f32 %v854, %v1075
        %v1077 = vpop.f32.mrf.mxu0
        %v1078 = vadd.f32 %v858, %v1077
        %v1079 = vpop.f32.mrf.mxu0
        %v1080 = vadd.f32 %v854, %v1079
        %v1081 = vpop.f32.mrf.mxu0
        %v1082 = vadd.f32 %v858, %v1081
        %1083 = vmatprep.mubr.bf16.mxu0 %v808
        %1084 = vmatmul.mubr.bf16.gmra.mxu0 %v807
        %v1085 = vpop.f32.mrf.mxu0
        %v1086 = vadd.f32 %v854, %v1085
        %v1087 = vpop.f32.mrf.mxu0
        %v1088 = vadd.f32 %v858, %v1087
        %v1089 = vpop.f32.mrf.mxu0
        %v1090 = vadd.f32 %v854, %v1089
        %v1091 = vpop.f32.mrf.mxu0
        %v1092 = vadd.f32 %v858, %v1091
        %1093 = vmatprep.mubr.bf16.mxu0 %v810
        %1094 = vmatmul.mubr.bf16.gmra.mxu0 %v809
        %v1095 = vpop.f32.mrf.mxu0
        %v1096 = vadd.f32 %v854, %v1095
        %v1097 = vpop.f32.mrf.mxu0
        %v1098 = vadd.f32 %v858, %v1097
        %v1099 = vpop.f32.mrf.mxu0
        %v1100 = vadd.f32 %v854, %v1099
        %v1101 = vpop.f32.mrf.mxu0
        %v1102 = vadd.f32 %v858, %v1101
        %1103 = vmatprep.mubr.bf16.mxu0 %v812
        %1104 = vmatmul.mubr.bf16.gmra.mxu0 %v811
        %v1105 = vpop.f32.mrf.mxu0
        %v1106 = vadd.f32 %v854, %v1105
        %v1107 = vpop.f32.mrf.mxu0
        %v1108 = vadd.f32 %v858, %v1107
        %v1109 = vpop.f32.mrf.mxu0
        %v1110 = vadd.f32 %v854, %v1109
        %v1111 = vpop.f32.mrf.mxu0
        %v1112 = vadd.f32 %v858, %v1111
        %1113 = vmatprep.mubr.bf16.mxu0 %v814
        %1114 = vmatmul.mubr.bf16.gmra.mxu0 %v813
        %v1115 = vpop.f32.mrf.mxu0
        %v1116 = vadd.f32 %v854, %v1115
        %v1117 = vpop.f32.mrf.mxu0
        %v1118 = vadd.f32 %v858, %v1117
        %v1119 = vpop.f32.mrf.mxu0
        %v1120 = vadd.f32 %v854, %v1119
        %v1121 = vpop.f32.mrf.mxu0
        %v1122 = vadd.f32 %v858, %v1121
        %1123 = vmatprep.mubr.bf16.mxu0 %v816
        %1124 = vmatmul.mubr.bf16.gmra.mxu0 %v815
        %v1125 = vpop.f32.mrf.mxu0
        %v1126 = vadd.f32 %v854, %v1125
        %v1127 = vpop.f32.mrf.mxu0
        %v1128 = vadd.f32 %v858, %v1127
        %v1129 = vpop.f32.mrf.mxu0
        %v1130 = vadd.f32 %v854, %v1129
        %v1131 = vpop.f32.mrf.mxu0
        %v1132 = vadd.f32 %v858, %v1131
        %1133 = vdwg.mxu0
        %v1134 = vmin.f32 %v1056, 20.0
        %v1135 = vmin.f32 %v1058, 20.0
        %v1136 = vmin.f32 %v1060, 20.0
        %v1137 = vmin.f32 %v1062, 20.0
        %v1138 = vmin.f32 %v1066, 20.0
        %v1139 = vmin.f32 %v1068, 20.0
        %v1140 = vmin.f32 %v1070, 20.0
        %v1141 = vmin.f32 %v1072, 20.0
        %v1142 = vmin.f32 %v1076, 20.0
        %v1143 = vmin.f32 %v1078, 20.0
        %v1144 = vmin.f32 %v1080, 20.0
        %v1145 = vmin.f32 %v1082, 20.0
        %v1146 = vmin.f32 %v1086, 20.0
        %v1147 = vmin.f32 %v1088, 20.0
        %v1148 = vmin.f32 %v1090, 20.0
        %v1149 = vmin.f32 %v1092, 20.0
        %v1150 = vmin.f32 %v1096, 20.0
        %v1151 = vmin.f32 %v1098, 20.0
        %v1152 = vmin.f32 %v1100, 20.0
        %v1153 = vmin.f32 %v1102, 20.0
        %v1154 = vmin.f32 %v1106, 20.0
        %v1155 = vmin.f32 %v1108, 20.0
        %v1156 = vmin.f32 %v1110, 20.0
        %v1157 = vmin.f32 %v1112, 20.0
        %v1158 = vmin.f32 %v1116, 20.0
        %v1159 = vmin.f32 %v1118, 20.0
        %v1160 = vmin.f32 %v1120, 20.0
        %v1161 = vmin.f32 %v1122, 20.0
        %v1162 = vmin.f32 %v1126, 20.0
        %v1163 = vmin.f32 %v1128, 20.0
        %v1164 = vmin.f32 %v1130, 20.0
        %v1165 = vmin.f32 %v1132, 20.0
        %v1166 = vmul.f32 %v1134, 1.442695
        %v1167 = vpow.pop %v1166
        %v1168 = vmul.f32 %v1135, 1.442695
        %v1169 = vpow.pop %v1168
        %v1170 = vmul.f32 %v1136, 1.442695
        %v1171 = vpow.pop %v1170
        %v1172 = vmul.f32 %v1137, 1.442695
        %v1173 = vpow.pop %v1172
        %v1174 = vmul.f32 %v1138, 1.442695
        %v1175 = vpow.pop %v1174
        %v1176 = vmul.f32 %v1139, 1.442695
        %v1177 = vpow.pop %v1176
        %v1178 = vmul.f32 %v1140, 1.442695
        %v1179 = vpow.pop %v1178
        %v1180 = vmul.f32 %v1141, 1.442695
        %v1181 = vpow.pop %v1180
        %v1182 = vmul.f32 %v1142, 1.442695
        %v1183 = vpow.pop %v1182
        %v1184 = vmul.f32 %v1143, 1.442695
        %v1185 = vpow.pop %v1184
        %v1186 = vmul.f32 %v1144, 1.442695
        %v1187 = vpow.pop %v1186
        %v1188 = vmul.f32 %v1145, 1.442695
        %v1189 = vpow.pop %v1188
        %v1190 = vmul.f32 %v1146, 1.442695
        %v1191 = vpow.pop %v1190
        %v1192 = vmul.f32 %v1147, 1.442695
        %v1193 = vpow.pop %v1192
        %v1194 = vmul.f32 %v1148, 1.442695
        %v1195 = vpow.pop %v1194
        %v1196 = vmul.f32 %v1149, 1.442695
        %v1197 = vpow.pop %v1196
        %v1198 = vmul.f32 %v1150, 1.442695
        %v1199 = vpow.pop %v1198
        %v1200 = vmul.f32 %v1151, 1.442695
        %v1201 = vpow.pop %v1200
        %v1202 = vmul.f32 %v1152, 1.442695
        %v1203 = vpow.pop %v1202
        %v1204 = vmul.f32 %v1153, 1.442695
        %v1205 = vpow.pop %v1204
        %v1206 = vmul.f32 %v1154, 1.442695
        %v1207 = vpow.pop %v1206
        %v1208 = vmul.f32 %v1155, 1.442695
        %v1209 = vpow.pop %v1208
        %v1210 = vmul.f32 %v1156, 1.442695
        %v1211 = vpow.pop %v1210
        %v1212 = vmul.f32 %v1157, 1.442695
        %v1213 = vpow.pop %v1212
        %v1214 = vmul.f32 %v1158, 1.442695
        %v1215 = vpow.pop %v1214
        %v1216 = vmul.f32 %v1159, 1.442695
        %v1217 = vpow.pop %v1216
        %v1218 = vmul.f32 %v1160, 1.442695
        %v1219 = vpow.pop %v1218
        %v1220 = vmul.f32 %v1161, 1.442695
        %v1221 = vpow.pop %v1220
        %v1222 = vmul.f32 %v1162, 1.442695
        %v1223 = vpow.pop %v1222
        %v1224 = vmul.f32 %v1163, 1.442695
        %v1225 = vpow.pop %v1224
        %v1226 = vmul.f32 %v1164, 1.442695
        %v1227 = vpow.pop %v1226
        %v1228 = vmul.f32 %v1165, 1.442695
        %v1229 = vpow.pop %v1228
        %v1230 = vadd.f32 %v1167, 2.0
        %v1231 = vadd.f32 %v1169, 2.0
        %v1232 = vadd.f32 %v1171, 2.0
        %v1233 = vadd.f32 %v1173, 2.0
        %v1234 = vadd.f32 %v1175, 2.0
        %v1235 = vadd.f32 %v1177, 2.0
        %v1236 = vadd.f32 %v1179, 2.0
        %v1237 = vadd.f32 %v1181, 2.0
        %v1238 = vadd.f32 %v1183, 2.0
        %v1239 = vadd.f32 %v1185, 2.0
        %v1240 = vadd.f32 %v1187, 2.0
        %v1241 = vadd.f32 %v1189, 2.0
        %v1242 = vadd.f32 %v1191, 2.0
        %v1243 = vadd.f32 %v1193, 2.0
        %v1244 = vadd.f32 %v1195, 2.0
        %v1245 = vadd.f32 %v1197, 2.0
        %v1246 = vadd.f32 %v1199, 2.0
        %v1247 = vadd.f32 %v1201, 2.0
        %v1248 = vadd.f32 %v1203, 2.0
        %v1249 = vadd.f32 %v1205, 2.0
        %v1250 = vadd.f32 %v1207, 2.0
        %v1251 = vadd.f32 %v1209, 2.0
        %v1252 = vadd.f32 %v1211, 2.0
        %v1253 = vadd.f32 %v1213, 2.0
        %v1254 = vadd.f32 %v1215, 2.0
        %v1255 = vadd.f32 %v1217, 2.0
        %v1256 = vadd.f32 %v1219, 2.0
        %v1257 = vadd.f32 %v1221, 2.0
        %v1258 = vadd.f32 %v1223, 2.0
        %v1259 = vadd.f32 %v1225, 2.0
        %v1260 = vadd.f32 %v1227, 2.0
        %v1261 = vadd.f32 %v1229, 2.0
        %v1262 = vmul.f32 %v1167, %v1230
        %v1263 = vmul.f32 %v1169, %v1231
        %v1264 = vmul.f32 %v1171, %v1232
        %v1265 = vmul.f32 %v1173, %v1233
        %v1266 = vmul.f32 %v1175, %v1234
        %v1267 = vmul.f32 %v1177, %v1235
        %v1268 = vmul.f32 %v1179, %v1236
        %v1269 = vmul.f32 %v1181, %v1237
        %v1270 = vmul.f32 %v1183, %v1238
        %v1271 = vmul.f32 %v1185, %v1239
        %v1272 = vmul.f32 %v1187, %v1240
        %v1273 = vmul.f32 %v1189, %v1241
        %v1274 = vmul.f32 %v1191, %v1242
        %v1275 = vmul.f32 %v1193, %v1243
        %v1276 = vmul.f32 %v1195, %v1244
        %v1277 = vmul.f32 %v1197, %v1245
        %v1278 = vmul.f32 %v1199, %v1246
        %v1279 = vmul.f32 %v1201, %v1247
        %v1280 = vmul.f32 %v1203, %v1248
        %v1281 = vmul.f32 %v1205, %v1249
        %v1282 = vmul.f32 %v1207, %v1250
        %v1283 = vmul.f32 %v1209, %v1251
        %v1284 = vmul.f32 %v1211, %v1252
        %v1285 = vmul.f32 %v1213, %v1253
        %v1286 = vmul.f32 %v1215, %v1254
        %v1287 = vmul.f32 %v1217, %v1255
        %v1288 = vmul.f32 %v1219, %v1256
        %v1289 = vmul.f32 %v1221, %v1257
        %v1290 = vmul.f32 %v1223, %v1258
        %v1291 = vmul.f32 %v1225, %v1259
        %v1292 = vmul.f32 %v1227, %v1260
        %v1293 = vmul.f32 %v1229, %v1261
        %v1294 = vmul.f32 %v1056, %v1262
        %v1295 = vmul.f32 %v1058, %v1263
        %v1296 = vmul.f32 %v1060, %v1264
        %v1297 = vmul.f32 %v1062, %v1265
        %v1298 = vmul.f32 %v1066, %v1266
        %v1299 = vmul.f32 %v1068, %v1267
        %v1300 = vmul.f32 %v1070, %v1268
        %v1301 = vmul.f32 %v1072, %v1269
        %v1302 = vmul.f32 %v1076, %v1270
        %v1303 = vmul.f32 %v1078, %v1271
        %v1304 = vmul.f32 %v1080, %v1272
        %v1305 = vmul.f32 %v1082, %v1273
        %v1306 = vmul.f32 %v1086, %v1274
        %v1307 = vmul.f32 %v1088, %v1275
        %v1308 = vmul.f32 %v1090, %v1276
        %v1309 = vmul.f32 %v1092, %v1277
        %v1310 = vmul.f32 %v1096, %v1278
        %v1311 = vmul.f32 %v1098, %v1279
        %v1312 = vmul.f32 %v1100, %v1280
        %v1313 = vmul.f32 %v1102, %v1281
        %v1314 = vmul.f32 %v1106, %v1282
        %v1315 = vmul.f32 %v1108, %v1283
        %v1316 = vmul.f32 %v1110, %v1284
        %v1317 = vmul.f32 %v1112, %v1285
        %v1318 = vmul.f32 %v1116, %v1286
        %v1319 = vmul.f32 %v1118, %v1287
        %v1320 = vmul.f32 %v1120, %v1288
        %v1321 = vmul.f32 %v1122, %v1289
        %v1322 = vmul.f32 %v1126, %v1290
        %v1323 = vmul.f32 %v1128, %v1291
        %v1324 = vmul.f32 %v1130, %v1292
        %v1325 = vmul.f32 %v1132, %v1293
        %v1326 = vadd.f32 %v1262, 2.0
        %v1327 = vadd.f32 %v1263, 2.0
        %v1328 = vadd.f32 %v1264, 2.0
        %v1329 = vadd.f32 %v1265, 2.0
        %v1330 = vadd.f32 %v1266, 2.0
        %v1331 = vadd.f32 %v1267, 2.0
        %v1332 = vadd.f32 %v1268, 2.0
        %v1333 = vadd.f32 %v1269, 2.0
        %v1334 = vadd.f32 %v1270, 2.0
        %v1335 = vadd.f32 %v1271, 2.0
        %v1336 = vadd.f32 %v1272, 2.0
        %v1337 = vadd.f32 %v1273, 2.0
        %v1338 = vadd.f32 %v1274, 2.0
        %v1339 = vadd.f32 %v1275, 2.0
        %v1340 = vadd.f32 %v1276, 2.0
        %v1341 = vadd.f32 %v1277, 2.0
        %v1342 = vadd.f32 %v1278, 2.0
        %v1343 = vadd.f32 %v1279, 2.0
        %v1344 = vadd.f32 %v1280, 2.0
        %v1345 = vadd.f32 %v1281, 2.0
        %v1346 = vadd.f32 %v1282, 2.0
        %v1347 = vadd.f32 %v1283, 2.0
        %v1348 = vadd.f32 %v1284, 2.0
        %v1349 = vadd.f32 %v1285, 2.0
        %v1350 = vadd.f32 %v1286, 2.0
        %v1351 = vadd.f32 %v1287, 2.0
        %v1352 = vadd.f32 %v1288, 2.0
        %v1353 = vadd.f32 %v1289, 2.0
        %v1354 = vadd.f32 %v1290, 2.0
        %v1355 = vadd.f32 %v1291, 2.0
        %v1356 = vadd.f32 %v1292, 2.0
        %v1357 = vadd.f32 %v1293, 2.0
        %v1358 = vrcp.pop %v1326
        %v1359 = vrcp.pop %v1327
        %v1360 = vrcp.pop %v1328
        %v1361 = vrcp.pop %v1329
        %v1362 = vrcp.pop %v1330
        %v1363 = vrcp.pop %v1331
        %v1364 = vrcp.pop %v1332
        %v1365 = vrcp.pop %v1333
        %v1366 = vrcp.pop %v1334
        %v1367 = vrcp.pop %v1335
        %v1368 = vrcp.pop %v1336
        %v1369 = vrcp.pop %v1337
        %v1370 = vrcp.pop %v1338
        %v1371 = vrcp.pop %v1339
        %v1372 = vrcp.pop %v1340
        %v1373 = vrcp.pop %v1341
        %v1374 = vrcp.pop %v1342
        %v1375 = vrcp.pop %v1343
        %v1376 = vrcp.pop %v1344
        %v1377 = vrcp.pop %v1345
        %v1378 = vrcp.pop %v1346
        %v1379 = vrcp.pop %v1347
        %v1380 = vrcp.pop %v1348
        %v1381 = vrcp.pop %v1349
        %v1382 = vrcp.pop %v1350
        %v1383 = vrcp.pop %v1351
        %v1384 = vrcp.pop %v1352
        %v1385 = vrcp.pop %v1353
        %v1386 = vrcp.pop %v1354
        %v1387 = vrcp.pop %v1355
        %v1388 = vrcp.pop %v1356
        %v1389 = vrcp.pop %v1357
        %v1390 = vmul.f32 %v1294, %v1358
        %v1391 = vmul.f32 %v1295, %v1359
        %v1392 = vmul.f32 %v1296, %v1360
        %v1393 = vmul.f32 %v1297, %v1361
        %v1394 = vmul.f32 %v1298, %v1362
        %v1395 = vmul.f32 %v1299, %v1363
        %v1396 = vmul.f32 %v1300, %v1364
        %v1397 = vmul.f32 %v1301, %v1365
        %v1398 = vmul.f32 %v1302, %v1366
        %v1399 = vmul.f32 %v1303, %v1367
        %v1400 = vmul.f32 %v1304, %v1368
        %v1401 = vmul.f32 %v1305, %v1369
        %v1402 = vmul.f32 %v1306, %v1370
        %v1403 = vmul.f32 %v1307, %v1371
        %v1404 = vmul.f32 %v1308, %v1372
        %v1405 = vmul.f32 %v1309, %v1373
        %v1406 = vmul.f32 %v1310, %v1374
        %v1407 = vmul.f32 %v1311, %v1375
        %v1408 = vmul.f32 %v1312, %v1376
        %v1409 = vmul.f32 %v1313, %v1377
        %v1410 = vmul.f32 %v1314, %v1378
        %v1411 = vmul.f32 %v1315, %v1379
        %v1412 = vmul.f32 %v1316, %v1380
        %v1413 = vmul.f32 %v1317, %v1381
        %v1414 = vmul.f32 %v1318, %v1382
        %v1415 = vmul.f32 %v1319, %v1383
        %v1416 = vmul.f32 %v1320, %v1384
        %v1417 = vmul.f32 %v1321, %v1385
        %v1418 = vmul.f32 %v1322, %v1386
        %v1419 = vmul.f32 %v1323, %v1387
        %v1420 = vmul.f32 %v1324, %v1388
        %v1421 = vmul.f32 %v1325, %v1389
        %v1422 = vpack.c.bf16 %v1392, %v1390
        %v1423 = vpack.c.bf16 %v1393, %v1391
        %v1424 = vpack.c.bf16 %v1396, %v1394
        %v1425 = vpack.c.bf16 %v1397, %v1395
        %v1426 = vpack.c.bf16 %v1400, %v1398
        %v1427 = vpack.c.bf16 %v1401, %v1399
        %v1428 = vpack.c.bf16 %v1404, %v1402
        %v1429 = vpack.c.bf16 %v1405, %v1403
        %v1430 = vpack.c.bf16 %v1408, %v1406
        %v1431 = vpack.c.bf16 %v1409, %v1407
        %v1432 = vpack.c.bf16 %v1412, %v1410
        %v1433 = vpack.c.bf16 %v1413, %v1411
        %v1434 = vpack.c.bf16 %v1416, %v1414
        %v1435 = vpack.c.bf16 %v1417, %v1415
        %v1436 = vpack.c.bf16 %v1420, %v1418
        %v1437 = vpack.c.bf16 %v1421, %v1419
        %s1438 = scalar_lea.vmem [#allocation2], 256
        %v1439 = vld [vmem:[%s1438] sm:$0xff]
        %v1440 = vld [vmem:[%s1438 + $0x8] sm:$0xff]
        %v1441 = vld [vmem:[%s1438 + $0x10] sm:$0xff]
        %v1442 = vld [vmem:[%s1438 + $0x18] sm:$0xff]
        %v1443 = vld [vmem:[%s1438 + $0x20] sm:$0xff]
        %v1444 = vld [vmem:[%s1438 + $0x28] sm:$0xff]
        %v1445 = vld [vmem:[%s1438 + $0x30] sm:$0xff]
        %v1446 = vld [vmem:[%s1438 + $0x38] sm:$0xff]
        %v1447 = vld [vmem:[%s1438 + $0x40] sm:$0xff]
        %v1448 = vld [vmem:[%s1438 + $0x48] sm:$0xff]
        %v1449 = vld [vmem:[%s1438 + $0x50] sm:$0xff]
        %v1450 = vld [vmem:[%s1438 + $0x58] sm:$0xff]
        %v1451 = vld [vmem:[%s1438 + $0x60] sm:$0xff]
        %v1452 = vld [vmem:[%s1438 + $0x68] sm:$0xff]
        %v1453 = vld [vmem:[%s1438 + $0x70] sm:$0xff]
        %v1454 = vld [vmem:[%s1438 + $0x78] sm:$0xff]
        %v1455 = vld [vmem:[%s1438 + $0x80] sm:$0xff]
        %v1456 = vld [vmem:[%s1438 + $0x88] sm:$0xff]
        %v1457 = vld [vmem:[%s1438 + $0x90] sm:$0xff]
        %v1458 = vld [vmem:[%s1438 + $0x98] sm:$0xff]
        %v1459 = vld [vmem:[%s1438 + $0xa0] sm:$0xff]
        %v1460 = vld [vmem:[%s1438 + $0xa8] sm:$0xff]
        %v1461 = vld [vmem:[%s1438 + $0xb0] sm:$0xff]
        %v1462 = vld [vmem:[%s1438 + $0xb8] sm:$0xff]
        %v1463 = vld [vmem:[%s1438 + $0xc0] sm:$0xff]
        %v1464 = vld [vmem:[%s1438 + $0xc8] sm:$0xff]
        %v1465 = vld [vmem:[%s1438 + $0xd0] sm:$0xff]
        %v1466 = vld [vmem:[%s1438 + $0xd8] sm:$0xff]
        %v1467 = vld [vmem:[%s1438 + $0xe0] sm:$0xff]
        %v1468 = vld [vmem:[%s1438 + $0xe8] sm:$0xff]
        %v1469 = vld [vmem:[%s1438 + $0xf0] sm:$0xff]
        %v1470 = vld [vmem:[%s1438 + $0xf8] sm:$0xff]
        %s1471 = scalar_lea.vmem %s4, 2
        %v1472 = vld [vmem:[%s1471] sm:$0x3]
        %v1474 = vlaneseq
        %v1475 = vshrl.u32 %v1474, 7
        %v1476 = vsub.s32 0, %v1475
        %v1477 = vrot.slane %v1472, %v1476
        %v1478 = vlaneseq
        %v1479 = vshrl.u32 %v1478, 7
        %v1480 = vsub.s32 1, %v1479
        %v1481 = vrot.slane %v1472, %v1480
        %v1516 = vunpack.c.l.b16 %v1439
        %v1517 = vunpack.c.h.b16 %v1439
        %v1518 = vunpack.c.l.b16 %v1440
        %v1519 = vunpack.c.h.b16 %v1440
        %v1520 = vunpack.c.l.b16 %v1441
        %v1521 = vunpack.c.h.b16 %v1441
        %v1522 = vunpack.c.l.b16 %v1442
        %v1523 = vunpack.c.h.b16 %v1442
        %v1524 = vunpack.c.l.b16 %v1443
        %v1525 = vunpack.c.h.b16 %v1443
        %v1526 = vunpack.c.l.b16 %v1444
        %v1527 = vunpack.c.h.b16 %v1444
        %v1528 = vunpack.c.l.b16 %v1445
        %v1529 = vunpack.c.h.b16 %v1445
        %v1530 = vunpack.c.l.b16 %v1446
        %v1531 = vunpack.c.h.b16 %v1446
        %v1532 = vunpack.c.l.b16 %v1447
        %v1533 = vunpack.c.h.b16 %v1447
        %v1534 = vunpack.c.l.b16 %v1448
        %v1535 = vunpack.c.h.b16 %v1448
        %v1536 = vunpack.c.l.b16 %v1449
        %v1537 = vunpack.c.h.b16 %v1449
        %v1538 = vunpack.c.l.b16 %v1450
        %v1539 = vunpack.c.h.b16 %v1450
        %v1540 = vunpack.c.l.b16 %v1451
        %v1541 = vunpack.c.h.b16 %v1451
        %v1542 = vunpack.c.l.b16 %v1452
        %v1543 = vunpack.c.h.b16 %v1452
        %v1544 = vunpack.c.l.b16 %v1453
        %v1545 = vunpack.c.h.b16 %v1453
        %v1546 = vunpack.c.l.b16 %v1454
        %v1547 = vunpack.c.h.b16 %v1454
        %v1548 = vunpack.c.l.b16 %v1455
        %v1549 = vunpack.c.h.b16 %v1455
        %v1550 = vunpack.c.l.b16 %v1456
        %v1551 = vunpack.c.h.b16 %v1456
        %v1552 = vunpack.c.l.b16 %v1457
        %v1553 = vunpack.c.h.b16 %v1457
        %v1554 = vunpack.c.l.b16 %v1458
        %v1555 = vunpack.c.h.b16 %v1458
        %v1556 = vunpack.c.l.b16 %v1459
        %v1557 = vunpack.c.h.b16 %v1459
        %v1558 = vunpack.c.l.b16 %v1460
        %v1559 = vunpack.c.h.b16 %v1460
        %v1560 = vunpack.c.l.b16 %v1461
        %v1561 = vunpack.c.h.b16 %v1461
        %v1562 = vunpack.c.l.b16 %v1462
        %v1563 = vunpack.c.h.b16 %v1462
        %v1564 = vunpack.c.l.b16 %v1463
        %v1565 = vunpack.c.h.b16 %v1463
        %v1566 = vunpack.c.l.b16 %v1464
        %v1567 = vunpack.c.h.b16 %v1464
        %v1568 = vunpack.c.l.b16 %v1465
        %v1569 = vunpack.c.h.b16 %v1465
        %v1570 = vunpack.c.l.b16 %v1466
        %v1571 = vunpack.c.h.b16 %v1466
        %v1572 = vunpack.c.l.b16 %v1467
        %v1573 = vunpack.c.h.b16 %v1467
        %v1574 = vunpack.c.l.b16 %v1468
        %v1575 = vunpack.c.h.b16 %v1468
        %v1576 = vunpack.c.l.b16 %v1469
        %v1577 = vunpack.c.h.b16 %v1469
        %v1578 = vunpack.c.l.b16 %v1470
        %v1579 = vunpack.c.h.b16 %v1470
        %v1580 = vpack.c.b16 %v1518, %v1516
        %v1581 = vpack.c.b16 %v1519, %v1517
        %v1582 = vpack.c.b16 %v1522, %v1520
        %v1583 = vpack.c.b16 %v1523, %v1521
        %v1584 = vpack.c.b16 %v1526, %v1524
        %v1585 = vpack.c.b16 %v1527, %v1525
        %v1586 = vpack.c.b16 %v1530, %v1528
        %v1587 = vpack.c.b16 %v1531, %v1529
        %v1588 = vpack.c.b16 %v1534, %v1532
        %v1589 = vpack.c.b16 %v1535, %v1533
        %v1590 = vpack.c.b16 %v1538, %v1536
        %v1591 = vpack.c.b16 %v1539, %v1537
        %v1592 = vpack.c.b16 %v1542, %v1540
        %v1593 = vpack.c.b16 %v1543, %v1541
        %v1594 = vpack.c.b16 %v1546, %v1544
        %v1595 = vpack.c.b16 %v1547, %v1545
        %v1596 = vpack.c.b16 %v1550, %v1548
        %v1597 = vpack.c.b16 %v1551, %v1549
        %v1598 = vpack.c.b16 %v1554, %v1552
        %v1599 = vpack.c.b16 %v1555, %v1553
        %v1600 = vpack.c.b16 %v1558, %v1556
        %v1601 = vpack.c.b16 %v1559, %v1557
        %v1602 = vpack.c.b16 %v1562, %v1560
        %v1603 = vpack.c.b16 %v1563, %v1561
        %v1604 = vpack.c.b16 %v1566, %v1564
        %v1605 = vpack.c.b16 %v1567, %v1565
        %v1606 = vpack.c.b16 %v1570, %v1568
        %v1607 = vpack.c.b16 %v1571, %v1569
        %v1608 = vpack.c.b16 %v1574, %v1572
        %v1609 = vpack.c.b16 %v1575, %v1573
        %v1610 = vpack.c.b16 %v1578, %v1576
        %v1611 = vpack.c.b16 %v1579, %v1577
        %1644 = vmatprep.subr.bf16.mxu0 %v1595
        %1645 = vmatpush1.bf16.msra.mxu0 %v1594
        %1646 = vmatprep.subr.bf16.mxu0 %v1593
        %1647 = vmatpush1.bf16.msra.mxu0 %v1592
        %1648 = vmatprep.subr.bf16.mxu0 %v1591
        %1649 = vmatpush1.bf16.msra.mxu0 %v1590
        %1650 = vmatprep.subr.bf16.mxu0 %v1589
        %1651 = vmatpush1.bf16.msra.mxu0 %v1588
        %1652 = vmatprep.subr.bf16.mxu0 %v1587
        %1653 = vmatpush1.bf16.msra.mxu0 %v1586
        %1654 = vmatprep.subr.bf16.mxu0 %v1585
        %1655 = vmatpush1.bf16.msra.mxu0 %v1584
        %1656 = vmatprep.subr.bf16.mxu0 %v1583
        %1657 = vmatpush1.bf16.msra.mxu0 %v1582
        %1658 = vmatprep.subr.bf16.mxu0 %v1581
        %1659 = vmatpush1.bf16.msra.mxu0 %v1580
        %1660 = vmatprep.subr.bf16.mxu0 %v1611
        %1661 = vmatpush2.bf16.msra.mxu0 %v1610
        %1662 = vmatprep.subr.bf16.mxu0 %v1609
        %1663 = vmatpush2.bf16.msra.mxu0 %v1608
        %1664 = vmatprep.subr.bf16.mxu0 %v1607
        %1665 = vmatpush2.bf16.msra.mxu0 %v1606
        %1666 = vmatprep.subr.bf16.mxu0 %v1605
        %1667 = vmatpush2.bf16.msra.mxu0 %v1604
        %1668 = vmatprep.subr.bf16.mxu0 %v1603
        %1669 = vmatpush2.bf16.msra.mxu0 %v1602
        %1670 = vmatprep.subr.bf16.mxu0 %v1601
        %1671 = vmatpush2.bf16.msra.mxu0 %v1600
        %1672 = vmatprep.subr.bf16.mxu0 %v1599
        %1673 = vmatpush2.bf16.msra.mxu0 %v1598
        %1674 = vmatprep.subr.bf16.mxu0 %v1597
        %1675 = vmatpush2.bf16.msra.mxu0 %v1596
        %1676 = vmatprep.mubr.bf16.mxu0 %v1423
        %1677 = vmatmul.mubr.bf16.gmra.mxu0 %v1422
        %v1678 = vpop.f32.mrf.mxu0
        %v1679 = vadd.f32 %v1477, %v1678
        %v1680 = vpop.f32.mrf.mxu0
        %v1681 = vadd.f32 %v1481, %v1680
        %v1682 = vpop.f32.mrf.mxu0
        %v1683 = vadd.f32 %v1477, %v1682
        %v1684 = vpop.f32.mrf.mxu0
        %v1685 = vadd.f32 %v1481, %v1684
        %1686 = vmatprep.mubr.bf16.mxu0 %v1425
        %1687 = vmatmul.mubr.bf16.gmra.mxu0 %v1424
        %v1688 = vpop.f32.mrf.mxu0
        %v1689 = vadd.f32 %v1477, %v1688
        %v1690 = vpop.f32.mrf.mxu0
        %v1691 = vadd.f32 %v1481, %v1690
        %v1692 = vpop.f32.mrf.mxu0
        %v1693 = vadd.f32 %v1477, %v1692
        %v1694 = vpop.f32.mrf.mxu0
        %v1695 = vadd.f32 %v1481, %v1694
        %1696 = vmatprep.mubr.bf16.mxu0 %v1427
        %1697 = vmatmul.mubr.bf16.gmra.mxu0 %v1426
        %v1698 = vpop.f32.mrf.mxu0
        %v1699 = vadd.f32 %v1477, %v1698
        %v1700 = vpop.f32.mrf.mxu0
        %v1701 = vadd.f32 %v1481, %v1700
        %v1702 = vpop.f32.mrf.mxu0
        %v1703 = vadd.f32 %v1477, %v1702
        %v1704 = vpop.f32.mrf.mxu0
        %v1705 = vadd.f32 %v1481, %v1704
        %1706 = vmatprep.mubr.bf16.mxu0 %v1429
        %1707 = vmatmul.mubr.bf16.gmra.mxu0 %v1428
        %v1708 = vpop.f32.mrf.mxu0
        %v1709 = vadd.f32 %v1477, %v1708
        %v1710 = vpop.f32.mrf.mxu0
        %v1711 = vadd.f32 %v1481, %v1710
        %v1712 = vpop.f32.mrf.mxu0
        %v1713 = vadd.f32 %v1477, %v1712
        %v1714 = vpop.f32.mrf.mxu0
        %v1715 = vadd.f32 %v1481, %v1714
        %1716 = vmatprep.mubr.bf16.mxu0 %v1431
        %1717 = vmatmul.mubr.bf16.gmra.mxu0 %v1430
        %v1718 = vpop.f32.mrf.mxu0
        %v1719 = vadd.f32 %v1477, %v1718
        %v1720 = vpop.f32.mrf.mxu0
        %v1721 = vadd.f32 %v1481, %v1720
        %v1722 = vpop.f32.mrf.mxu0
        %v1723 = vadd.f32 %v1477, %v1722
        %v1724 = vpop.f32.mrf.mxu0
        %v1725 = vadd.f32 %v1481, %v1724
        %1726 = vmatprep.mubr.bf16.mxu0 %v1433
        %1727 = vmatmul.mubr.bf16.gmra.mxu0 %v1432
        %v1728 = vpop.f32.mrf.mxu0
        %v1729 = vadd.f32 %v1477, %v1728
        %v1730 = vpop.f32.mrf.mxu0
        %v1731 = vadd.f32 %v1481, %v1730
        %v1732 = vpop.f32.mrf.mxu0
        %v1733 = vadd.f32 %v1477, %v1732
        %v1734 = vpop.f32.mrf.mxu0
        %v1735 = vadd.f32 %v1481, %v1734
        %1736 = vmatprep.mubr.bf16.mxu0 %v1435
        %1737 = vmatmul.mubr.bf16.gmra.mxu0 %v1434
        %v1738 = vpop.f32.mrf.mxu0
        %v1739 = vadd.f32 %v1477, %v1738
        %v1740 = vpop.f32.mrf.mxu0
        %v1741 = vadd.f32 %v1481, %v1740
        %v1742 = vpop.f32.mrf.mxu0
        %v1743 = vadd.f32 %v1477, %v1742
        %v1744 = vpop.f32.mrf.mxu0
        %v1745 = vadd.f32 %v1481, %v1744
        %1746 = vmatprep.mubr.bf16.mxu0 %v1437
        %1747 = vmatmul.mubr.bf16.gmra.mxu0 %v1436
        %v1748 = vpop.f32.mrf.mxu0
        %v1749 = vadd.f32 %v1477, %v1748
        %v1750 = vpop.f32.mrf.mxu0
        %v1751 = vadd.f32 %v1481, %v1750
        %v1752 = vpop.f32.mrf.mxu0
        %v1753 = vadd.f32 %v1477, %v1752
        %v1754 = vpop.f32.mrf.mxu0
        %v1755 = vadd.f32 %v1481, %v1754
        %1756 = vdwg.mxu0
        %v1757 = vmin.f32 %v1679, 20.0
        %v1758 = vmin.f32 %v1681, 20.0
        %v1759 = vmin.f32 %v1683, 20.0
        %v1760 = vmin.f32 %v1685, 20.0
        %v1761 = vmin.f32 %v1689, 20.0
        %v1762 = vmin.f32 %v1691, 20.0
        %v1763 = vmin.f32 %v1693, 20.0
        %v1764 = vmin.f32 %v1695, 20.0
        %v1765 = vmin.f32 %v1699, 20.0
        %v1766 = vmin.f32 %v1701, 20.0
        %v1767 = vmin.f32 %v1703, 20.0
        %v1768 = vmin.f32 %v1705, 20.0
        %v1769 = vmin.f32 %v1709, 20.0
        %v1770 = vmin.f32 %v1711, 20.0
        %v1771 = vmin.f32 %v1713, 20.0
        %v1772 = vmin.f32 %v1715, 20.0
        %v1773 = vmin.f32 %v1719, 20.0
        %v1774 = vmin.f32 %v1721, 20.0
        %v1775 = vmin.f32 %v1723, 20.0
        %v1776 = vmin.f32 %v1725, 20.0
        %v1777 = vmin.f32 %v1729, 20.0
        %v1778 = vmin.f32 %v1731, 20.0
        %v1779 = vmin.f32 %v1733, 20.0
        %v1780 = vmin.f32 %v1735, 20.0
        %v1781 = vmin.f32 %v1739, 20.0
        %v1782 = vmin.f32 %v1741, 20.0
        %v1783 = vmin.f32 %v1743, 20.0
        %v1784 = vmin.f32 %v1745, 20.0
        %v1785 = vmin.f32 %v1749, 20.0
        %v1786 = vmin.f32 %v1751, 20.0
        %v1787 = vmin.f32 %v1753, 20.0
        %v1788 = vmin.f32 %v1755, 20.0
        %v1789 = vmul.f32 %v1757, 1.442695
        %v1790 = vpow.pop %v1789
        %v1791 = vmul.f32 %v1758, 1.442695
        %v1792 = vpow.pop %v1791
        %v1793 = vmul.f32 %v1759, 1.442695
        %v1794 = vpow.pop %v1793
        %v1795 = vmul.f32 %v1760, 1.442695
        %v1796 = vpow.pop %v1795
        %v1797 = vmul.f32 %v1761, 1.442695
        %v1798 = vpow.pop %v1797
        %v1799 = vmul.f32 %v1762, 1.442695
        %v1800 = vpow.pop %v1799
        %v1801 = vmul.f32 %v1763, 1.442695
        %v1802 = vpow.pop %v1801
        %v1803 = vmul.f32 %v1764, 1.442695
        %v1804 = vpow.pop %v1803
        %v1805 = vmul.f32 %v1765, 1.442695
        %v1806 = vpow.pop %v1805
        %v1807 = vmul.f32 %v1766, 1.442695
        %v1808 = vpow.pop %v1807
        %v1809 = vmul.f32 %v1767, 1.442695
        %v1810 = vpow.pop %v1809
        %v1811 = vmul.f32 %v1768, 1.442695
        %v1812 = vpow.pop %v1811
        %v1813 = vmul.f32 %v1769, 1.442695
        %v1814 = vpow.pop %v1813
        %v1815 = vmul.f32 %v1770, 1.442695
        %v1816 = vpow.pop %v1815
        %v1817 = vmul.f32 %v1771, 1.442695
        %v1818 = vpow.pop %v1817
        %v1819 = vmul.f32 %v1772, 1.442695
        %v1820 = vpow.pop %v1819
        %v1821 = vmul.f32 %v1773, 1.442695
        %v1822 = vpow.pop %v1821
        %v1823 = vmul.f32 %v1774, 1.442695
        %v1824 = vpow.pop %v1823
        %v1825 = vmul.f32 %v1775, 1.442695
        %v1826 = vpow.pop %v1825
        %v1827 = vmul.f32 %v1776, 1.442695
        %v1828 = vpow.pop %v1827
        %v1829 = vmul.f32 %v1777, 1.442695
        %v1830 = vpow.pop %v1829
        %v1831 = vmul.f32 %v1778, 1.442695
        %v1832 = vpow.pop %v1831
        %v1833 = vmul.f32 %v1779, 1.442695
        %v1834 = vpow.pop %v1833
        %v1835 = vmul.f32 %v1780, 1.442695
        %v1836 = vpow.pop %v1835
        %v1837 = vmul.f32 %v1781, 1.442695
        %v1838 = vpow.pop %v1837
        %v1839 = vmul.f32 %v1782, 1.442695
        %v1840 = vpow.pop %v1839
        %v1841 = vmul.f32 %v1783, 1.442695
        %v1842 = vpow.pop %v1841
        %v1843 = vmul.f32 %v1784, 1.442695
        %v1844 = vpow.pop %v1843
        %v1845 = vmul.f32 %v1785, 1.442695
        %v1846 = vpow.pop %v1845
        %v1847 = vmul.f32 %v1786, 1.442695
        %v1848 = vpow.pop %v1847
        %v1849 = vmul.f32 %v1787, 1.442695
        %v1850 = vpow.pop %v1849
        %v1851 = vmul.f32 %v1788, 1.442695
        %v1852 = vpow.pop %v1851
        %v1853 = vadd.f32 %v1790, 2.0
        %v1854 = vadd.f32 %v1792, 2.0
        %v1855 = vadd.f32 %v1794, 2.0
        %v1856 = vadd.f32 %v1796, 2.0
        %v1857 = vadd.f32 %v1798, 2.0
        %v1858 = vadd.f32 %v1800, 2.0
        %v1859 = vadd.f32 %v1802, 2.0
        %v1860 = vadd.f32 %v1804, 2.0
        %v1861 = vadd.f32 %v1806, 2.0
        %v1862 = vadd.f32 %v1808, 2.0
        %v1863 = vadd.f32 %v1810, 2.0
        %v1864 = vadd.f32 %v1812, 2.0
        %v1865 = vadd.f32 %v1814, 2.0
        %v1866 = vadd.f32 %v1816, 2.0
        %v1867 = vadd.f32 %v1818, 2.0
        %v1868 = vadd.f32 %v1820, 2.0
        %v1869 = vadd.f32 %v1822, 2.0
        %v1870 = vadd.f32 %v1824, 2.0
        %v1871 = vadd.f32 %v1826, 2.0
        %v1872 = vadd.f32 %v1828, 2.0
        %v1873 = vadd.f32 %v1830, 2.0
        %v1874 = vadd.f32 %v1832, 2.0
        %v1875 = vadd.f32 %v1834, 2.0
        %v1876 = vadd.f32 %v1836, 2.0
        %v1877 = vadd.f32 %v1838, 2.0
        %v1878 = vadd.f32 %v1840, 2.0
        %v1879 = vadd.f32 %v1842, 2.0
        %v1880 = vadd.f32 %v1844, 2.0
        %v1881 = vadd.f32 %v1846, 2.0
        %v1882 = vadd.f32 %v1848, 2.0
        %v1883 = vadd.f32 %v1850, 2.0
        %v1884 = vadd.f32 %v1852, 2.0
        %v1885 = vmul.f32 %v1790, %v1853
        %v1886 = vmul.f32 %v1792, %v1854
        %v1887 = vmul.f32 %v1794, %v1855
        %v1888 = vmul.f32 %v1796, %v1856
        %v1889 = vmul.f32 %v1798, %v1857
        %v1890 = vmul.f32 %v1800, %v1858
        %v1891 = vmul.f32 %v1802, %v1859
        %v1892 = vmul.f32 %v1804, %v1860
        %v1893 = vmul.f32 %v1806, %v1861
        %v1894 = vmul.f32 %v1808, %v1862
        %v1895 = vmul.f32 %v1810, %v1863
        %v1896 = vmul.f32 %v1812, %v1864
        %v1897 = vmul.f32 %v1814, %v1865
        %v1898 = vmul.f32 %v1816, %v1866
        %v1899 = vmul.f32 %v1818, %v1867
        %v1900 = vmul.f32 %v1820, %v1868
        %v1901 = vmul.f32 %v1822, %v1869
        %v1902 = vmul.f32 %v1824, %v1870
        %v1903 = vmul.f32 %v1826, %v1871
        %v1904 = vmul.f32 %v1828, %v1872
        %v1905 = vmul.f32 %v1830, %v1873
        %v1906 = vmul.f32 %v1832, %v1874
        %v1907 = vmul.f32 %v1834, %v1875
        %v1908 = vmul.f32 %v1836, %v1876
        %v1909 = vmul.f32 %v1838, %v1877
        %v1910 = vmul.f32 %v1840, %v1878
        %v1911 = vmul.f32 %v1842, %v1879
        %v1912 = vmul.f32 %v1844, %v1880
        %v1913 = vmul.f32 %v1846, %v1881
        %v1914 = vmul.f32 %v1848, %v1882
        %v1915 = vmul.f32 %v1850, %v1883
        %v1916 = vmul.f32 %v1852, %v1884
        %v1917 = vmul.f32 %v1679, %v1885
        %v1918 = vmul.f32 %v1681, %v1886
        %v1919 = vmul.f32 %v1683, %v1887
        %v1920 = vmul.f32 %v1685, %v1888
        %v1921 = vmul.f32 %v1689, %v1889
        %v1922 = vmul.f32 %v1691, %v1890
        %v1923 = vmul.f32 %v1693, %v1891
        %v1924 = vmul.f32 %v1695, %v1892
        %v1925 = vmul.f32 %v1699, %v1893
        %v1926 = vmul.f32 %v1701, %v1894
        %v1927 = vmul.f32 %v1703, %v1895
        %v1928 = vmul.f32 %v1705, %v1896
        %v1929 = vmul.f32 %v1709, %v1897
        %v1930 = vmul.f32 %v1711, %v1898
        %v1931 = vmul.f32 %v1713, %v1899
        %v1932 = vmul.f32 %v1715, %v1900
        %v1933 = vmul.f32 %v1719, %v1901
        %v1934 = vmul.f32 %v1721, %v1902
        %v1935 = vmul.f32 %v1723, %v1903
        %v1936 = vmul.f32 %v1725, %v1904
        %v1937 = vmul.f32 %v1729, %v1905
        %v1938 = vmul.f32 %v1731, %v1906
        %v1939 = vmul.f32 %v1733, %v1907
        %v1940 = vmul.f32 %v1735, %v1908
        %v1941 = vmul.f32 %v1739, %v1909
        %v1942 = vmul.f32 %v1741, %v1910
        %v1943 = vmul.f32 %v1743, %v1911
        %v1944 = vmul.f32 %v1745, %v1912
        %v1945 = vmul.f32 %v1749, %v1913
        %v1946 = vmul.f32 %v1751, %v1914
        %v1947 = vmul.f32 %v1753, %v1915
        %v1948 = vmul.f32 %v1755, %v1916
        %v1949 = vadd.f32 %v1885, 2.0
        %v1950 = vadd.f32 %v1886, 2.0
        %v1951 = vadd.f32 %v1887, 2.0
        %v1952 = vadd.f32 %v1888, 2.0
        %v1953 = vadd.f32 %v1889, 2.0
        %v1954 = vadd.f32 %v1890, 2.0
        %v1955 = vadd.f32 %v1891, 2.0
        %v1956 = vadd.f32 %v1892, 2.0
        %v1957 = vadd.f32 %v1893, 2.0
        %v1958 = vadd.f32 %v1894, 2.0
        %v1959 = vadd.f32 %v1895, 2.0
        %v1960 = vadd.f32 %v1896, 2.0
        %v1961 = vadd.f32 %v1897, 2.0
        %v1962 = vadd.f32 %v1898, 2.0
        %v1963 = vadd.f32 %v1899, 2.0
        %v1964 = vadd.f32 %v1900, 2.0
        %v1965 = vadd.f32 %v1901, 2.0
        %v1966 = vadd.f32 %v1902, 2.0
        %v1967 = vadd.f32 %v1903, 2.0
        %v1968 = vadd.f32 %v1904, 2.0
        %v1969 = vadd.f32 %v1905, 2.0
        %v1970 = vadd.f32 %v1906, 2.0
        %v1971 = vadd.f32 %v1907, 2.0
        %v1972 = vadd.f32 %v1908, 2.0
        %v1973 = vadd.f32 %v1909, 2.0
        %v1974 = vadd.f32 %v1910, 2.0
        %v1975 = vadd.f32 %v1911, 2.0
        %v1976 = vadd.f32 %v1912, 2.0
        %v1977 = vadd.f32 %v1913, 2.0
        %v1978 = vadd.f32 %v1914, 2.0
        %v1979 = vadd.f32 %v1915, 2.0
        %v1980 = vadd.f32 %v1916, 2.0
        %v1981 = vrcp.pop %v1949
        %v1982 = vrcp.pop %v1950
        %v1983 = vrcp.pop %v1951
        %v1984 = vrcp.pop %v1952
        %v1985 = vrcp.pop %v1953
        %v1986 = vrcp.pop %v1954
        %v1987 = vrcp.pop %v1955
        %v1988 = vrcp.pop %v1956
        %v1989 = vrcp.pop %v1957
        %v1990 = vrcp.pop %v1958
        %v1991 = vrcp.pop %v1959
        %v1992 = vrcp.pop %v1960
        %v1993 = vrcp.pop %v1961
        %v1994 = vrcp.pop %v1962
        %v1995 = vrcp.pop %v1963
        %v1996 = vrcp.pop %v1964
        %v1997 = vrcp.pop %v1965
        %v1998 = vrcp.pop %v1966
        %v1999 = vrcp.pop %v1967
        %v2000 = vrcp.pop %v1968
        %v2001 = vrcp.pop %v1969
        %v2002 = vrcp.pop %v1970
        %v2003 = vrcp.pop %v1971
        %v2004 = vrcp.pop %v1972
        %v2005 = vrcp.pop %v1973
        %v2006 = vrcp.pop %v1974
        %v2007 = vrcp.pop %v1975
        %v2008 = vrcp.pop %v1976
        %v2009 = vrcp.pop %v1977
        %v2010 = vrcp.pop %v1978
        %v2011 = vrcp.pop %v1979
        %v2012 = vrcp.pop %v1980
        %v2013 = vmul.f32 %v1917, %v1981
        %v2014 = vmul.f32 %v1918, %v1982
        %v2015 = vmul.f32 %v1919, %v1983
        %v2016 = vmul.f32 %v1920, %v1984
        %v2017 = vmul.f32 %v1921, %v1985
        %v2018 = vmul.f32 %v1922, %v1986
        %v2019 = vmul.f32 %v1923, %v1987
        %v2020 = vmul.f32 %v1924, %v1988
        %v2021 = vmul.f32 %v1925, %v1989
        %v2022 = vmul.f32 %v1926, %v1990
        %v2023 = vmul.f32 %v1927, %v1991
        %v2024 = vmul.f32 %v1928, %v1992
        %v2025 = vmul.f32 %v1929, %v1993
        %v2026 = vmul.f32 %v1930, %v1994
        %v2027 = vmul.f32 %v1931, %v1995
        %v2028 = vmul.f32 %v1932, %v1996
        %v2029 = vmul.f32 %v1933, %v1997
        %v2030 = vmul.f32 %v1934, %v1998
        %v2031 = vmul.f32 %v1935, %v1999
        %v2032 = vmul.f32 %v1936, %v2000
        %v2033 = vmul.f32 %v1937, %v2001
        %v2034 = vmul.f32 %v1938, %v2002
        %v2035 = vmul.f32 %v1939, %v2003
        %v2036 = vmul.f32 %v1940, %v2004
        %v2037 = vmul.f32 %v1941, %v2005
        %v2038 = vmul.f32 %v1942, %v2006
        %v2039 = vmul.f32 %v1943, %v2007
        %v2040 = vmul.f32 %v1944, %v2008
        %v2041 = vmul.f32 %v1945, %v2009
        %v2042 = vmul.f32 %v1946, %v2010
        %v2043 = vmul.f32 %v1947, %v2011
        %v2044 = vmul.f32 %v1948, %v2012
        %v2045 = vld [vmem:[%s5] sm:$0x3]
        %v2046 = vpack.c.bf16 %v2015, %v2013
        %v2047 = vpack.c.bf16 %v2016, %v2014
        %v2048 = vpack.c.bf16 %v2019, %v2017
        %v2049 = vpack.c.bf16 %v2020, %v2018
        %v2050 = vpack.c.bf16 %v2023, %v2021
        %v2051 = vpack.c.bf16 %v2024, %v2022
        %v2052 = vpack.c.bf16 %v2027, %v2025
        %v2053 = vpack.c.bf16 %v2028, %v2026
        %v2054 = vpack.c.bf16 %v2031, %v2029
        %v2055 = vpack.c.bf16 %v2032, %v2030
        %v2056 = vpack.c.bf16 %v2035, %v2033
        %v2057 = vpack.c.bf16 %v2036, %v2034
        %v2058 = vpack.c.bf16 %v2039, %v2037
        %v2059 = vpack.c.bf16 %v2040, %v2038
        %v2060 = vpack.c.bf16 %v2043, %v2041
        %v2061 = vpack.c.bf16 %v2044, %v2042
        %v2062 = vld [vmem:[%s6] sm:$0x3]
        %2064 = vset.pattern.permute.xlu0 0
        %2065 = vperm.xlu0 %2064, %v2062
        %v2066 = vpop.permute.xlu0 %2065
        %v2070 = vunpack.c.l.s4 1966171168
        %v2071 = vunpack.c.0.s8 %v2070
        %v2072 = vlaneseq
        %v2073 = vshrl.u32 %v2072, 7
        %v2074 = vsub.s32 %v2071, %v2073
        %v2075 = vrot.slane %v2045, %v2074
        %v2076 = vcombine.high %v2075, %v2075
        %v2078 = vunpack.c.l.s4 1966171168
        %v2079 = vunpack.c.0.s8 %v2078
        %v2080 = vlaneseq
        %v2081 = vshrl.u32 %v2080, 7
        %v2082 = vsub.s32 %v2079, %v2081
        %v2083 = vrot.slane %v2075, %v2082
        %v2085 = vunpack.c.l.s4 1966171168
        %v2086 = vunpack.c.0.s8 %v2085
        %v2087 = vlaneseq
        %v2088 = vshrl.u32 %v2087, 7
        %v2089 = vsub.s32 %v2086, %v2088
        %v2090 = vrot.slane %v2076, %v2089
        %2093 = vmatprep.subr.bf16.mxu0 %v2061
        %2094 = vmatpush1.bf16.xpose.msra.mxu0 %v2060
        %2095 = vmatprep.subr.bf16.mxu0 %v2059
        %2096 = vmatpush1.bf16.xpose.msra.mxu0 %v2058
        %2097 = vmatprep.subr.bf16.mxu0 %v2057
        %2098 = vmatpush1.bf16.xpose.msra.mxu0 %v2056
        %2099 = vmatprep.subr.bf16.mxu0 %v2055
        %2100 = vmatpush1.bf16.xpose.msra.mxu0 %v2054
        %2101 = vmatprep.subr.bf16.mxu0 %v2053
        %2102 = vmatpush1.bf16.xpose.msra.mxu0 %v2052
        %2103 = vmatprep.subr.bf16.mxu0 %v2051
        %2104 = vmatpush1.bf16.xpose.msra.mxu0 %v2050
        %2105 = vmatprep.subr.bf16.mxu0 %v2049
        %2106 = vmatpush1.bf16.xpose.msra.mxu0 %v2048
        %2107 = vmatprep.subr.bf16.mxu0 %v2047
        %2108 = vmatpush1.bf16.xpose.msra.mxu0 %v2046
        %2109 = vmatprep.subr.bf16.mxu0 0
        %2110 = vmatpush2.bf16.xpose.msra.mxu0 0
        %2111 = vmatprep.subr.bf16.mxu0 0
        %2112 = vmatpush2.bf16.xpose.msra.mxu0 0
        %2113 = vmatprep.subr.bf16.mxu0 0
        %2114 = vmatpush2.bf16.xpose.msra.mxu0 0
        %2115 = vmatprep.subr.bf16.mxu0 0
        %2116 = vmatpush2.bf16.xpose.msra.mxu0 0
        %2117 = vmatprep.subr.bf16.mxu0 0
        %2118 = vmatpush2.bf16.xpose.msra.mxu0 0
        %2119 = vmatprep.subr.bf16.mxu0 0
        %2120 = vmatpush2.bf16.xpose.msra.mxu0 0
        %2121 = vmatprep.subr.bf16.mxu0 0
        %2122 = vmatpush2.bf16.xpose.msra.mxu0 0
        %2123 = vmatprep.subr.bf16.mxu0 0
        %2124 = vmatpush2.bf16.xpose.msra.mxu0 0
        %2125 = vmatprep.mubr.bf16.mxu0 %v2090
        %2126 = vmatmul.mubr.bf16.gmra.mxu0 %v2083
        %v2127 = vpop.f32.mrf.mxu0
        %v2128 = vadd.f32 %v2066, %v2127
        %v2129 = vpop.f32.mrf.mxu0
        %v2130 = vpop.f32.mrf.mxu0
        %v2131 = vpop.f32.mrf.mxu0
        %2132 = vdwg.mxu0
        %2133 = vst [vmem:[%s287] sm:$0x3] %v2128
        %s2134 = sand.u32 %s182, 1
        %s2135 = scalar_lea.sflag [#allocation4], %s2134
        %s2136 = sand.u32 %s182, 1
        %s2137 = smul.addr %s2136, 2
        %s2138 = scalar_lea.vmem [#allocation5], %s2137
        // Predicated region
        $region53: #{tpu_custom_call.1} parent=47 // pred_check
          %p2139 = pneg %p192
        $region54: #{tpu_custom_call.1} parent=47 // pred_check_branch
          %2141 = sbr.rel (%p2139) target = $region56
        $region55: #{tpu_custom_call.1} parent=47 // pred_region
          %s2143 = ssub.s32 32, 32
          %2144 = vsyncadd %s2135, %s2143
          %s2145 = smul.addr %s22, 32
          %s2146 = scalar_lea.hbm %s7, %s2145
          %s2148 = sshll.u32 %s2138, 4
          %s2149 = int_to_ptr.vmem [resolvable:$true] %s2148
          %2151 = dma.vmem_to_hbm [thread:$0]  %s2149, 32, %s2146, %s2135
        $region56: #{tpu_custom_call.1} parent=47 // pred_fallthru
          _
      $region48: #{tpu_custom_call.1} parent=5 // pred_fallthru
        _
      %p2152 = scmp.le.s32.totalorder 2, %s17
      // Predicated region
      $region57: #{tpu_custom_call.1} parent=5 // pred_check
        %p2153 = pneg %p2152
      $region58: #{tpu_custom_call.1} parent=5 // pred_check_branch
        %2155 = sbr.rel (%p2153) target = $region60
      $region59: #{tpu_custom_call.1} parent=5 // pred_region
        %s2156 = ssub.s32 %s17, 2
        // Predicated region
        $region61: #{tpu_custom_call.1} parent=59 // pred_check
          %p2157 = pneg %p198
        $region62: #{tpu_custom_call.1} parent=59 // pred_check_branch
          %2159 = sbr.rel (%p2157) target = $region64
        $region63: #{tpu_custom_call.1} parent=59 // pred_region
          %s2160 = sand.u32 %s183, 1
          %s2161 = scalar_lea.sflag [#allocation4], %s2160
          %s2162 = sand.u32 %s183, 1
          %s2163 = smul.addr %s2162, 2
          %s2164 = scalar_lea.vmem [#allocation5], %s2163
          %2165 = dma.done %s2161, 32
        $region64: #{tpu_custom_call.1} parent=59 // pred_fallthru
          _
      $region60: #{tpu_custom_call.1} parent=5 // pred_fallthru
        _
    $region6: #{tpu_custom_call.1} parent=1 // loop_footer
      %s21 = sadd.s32 1, %s17
    $region7: #{tpu_custom_call.1} parent=1 // loop_footer_branch
      %16 = sbr.rel target = $region3
    $region8: #{tpu_custom_call.1} parent=1 // loop_exit
      _
    %2166 = vsyncpa [#allocation3], 1
    %s2167 = scalar_lea.sflag [#allocation3], 1
    %2168 = vsyncpa %s2167, 1
    %2169 = vsyncpa [#allocation4], 1
    %s2170 = scalar_lea.sflag [#allocation4], 1
    %2171 = vsyncpa %s2170, 1

</llo_original>
